<compile_context>
chip_gen: v7x
topology: tpu7x:2x2x1
jax: 0.10.0
libtpu: 0.0.40
codegen_flags: <defaults>
</compile_context>

<pallas_src>
import jax
import jax.numpy as jnp
from jax import lax
from jax.experimental import pallas as pl
from jax.experimental.pallas import tpu as pltpu  # noqa: F401  (kept for CompilerParams if needed)

D_IN = 128       # input_shape (fingerprint dim)
HID = 128        # args.num_filters
N_SUP = 16       # support examples per task
N_TGT = 16       # target examples per task
NUM_TASKS = 2    # args.meta_batch_size
NUM_STEPS = 2    # args.num_updates
TASK_LR = 0.01   # args.update_lr (LSLR init learning rate)
LN_EPS = 1e-5

OUT_LANES = 128          # lane-dense merged output row per task
LOSS_LANE = N_TGT        # lane 16: per-task multi-step loss
ACC_LANE = N_TGT + 1     # lane 17: per-task pearson accuracy


def per_step_loss_importance_vector(num_updates, current_epoch=0,
                                    multi_step_loss_num_epochs=10):
    # mirrors get_per_step_loss_importance_vector; at epoch 0 all equal 1/n.
    w = [1.0 / num_updates] * num_updates
    decay = 1.0 / num_updates / multi_step_loss_num_epochs
    min_non_final = 0.03 / num_updates
    for i in range(num_updates - 1):
        w[i] = max(w[i] - current_epoch * decay, min_non_final)
    w[-1] = min(w[-1] + current_epoch * (num_updates - 1) * decay,
                1.0 - (num_updates - 1) * min_non_final)
    return tuple(float(v) for v in w)


IMPORTANCE = per_step_loss_importance_vector(NUM_STEPS)   # static at epoch 0


# ----------------------------- Pallas kernel --------------------------------

def _layernorm_relu(h, gamma, beta):
    mu = jnp.mean(h, axis=-1, keepdims=True)
    var = jnp.mean((h - mu) ** 2, axis=-1, keepdims=True)
    h = (h - mu) * lax.rsqrt(var + LN_EPS) * gamma + beta
    return jnp.maximum(h, 0.0)


def _head_eval(w, b, f):
    # w: (T|1, HID), b: (T|1, 1), f: (T, R, HID) -> (T, R) predictions.
    # VPU broadcast-multiply + XLU lane reduce; no M=1 MXU round-trip.
    return jnp.sum(f * w[:, None, :], axis=-1) + b


def _head_grad(err, f):
    # err: (T, N_SUP), f: (T, N_SUP, HID) -> dW (T, HID), db (T, 1).
    # Keep the (1,N)x(N,H) contraction on the MXU (batched einsum).
    gw = jnp.einsum('tqn,tnh->tqh', err[:, None, :], f,
                    preferred_element_type=jnp.float32).reshape(NUM_TASKS, HID)
    gw = gw * (2.0 / N_SUP)
    gb = jnp.sum(err, axis=-1, keepdims=True) * (2.0 / N_SUP)
    return gw, gb


def maml_kernel(sx_ref, sy_ref, tx_ref, ty_ref,
                w1_ref, b1_ref, g1_ref, be1_ref,
                w2_ref, b2_ref, g2_ref, be2_ref,
                hw_ref, hb_ref,
                out_ref):
    """All tasks, both feature stages, and the full inner loop in one body."""
    # ---- stack all tasks' support+target rows into one (64, 128) slab ----
    sx = sx_ref[...].reshape(NUM_TASKS * N_SUP, D_IN)
    tx = tx_ref[...].reshape(NUM_TASKS * N_TGT, D_IN)
    x = jnp.concatenate([sx, tx], axis=0)                     # (64, D_IN), aligned

    # ---- feature extractor: 2 x [Linear -> LayerNorm -> ReLU], one matmul each
    h = jnp.dot(x, w1_ref[...], preferred_element_type=jnp.float32) + b1_ref[...]
    h = _layernorm_relu(h, g1_ref[...], be1_ref[...])
    h = jnp.dot(h, w2_ref[...], preferred_element_type=jnp.float32) + b2_ref[...]
    feat = _layernorm_relu(h, g2_ref[...], be2_ref[...])      # (64, HID)

    sup_feat = feat[:NUM_TASKS * N_SUP].reshape(NUM_TASKS, N_SUP, HID)
    tgt_feat = feat[NUM_TASKS * N_SUP:].reshape(NUM_TASKS, N_TGT, HID)

    sy = sy_ref[...]                                          # (T, N_SUP) lane-dense
    ty = ty_ref[...]                                          # (T, N_TGT) lane-dense

    # head state (shared init, per-task after first update via broadcasting)
    w = hw_ref[...]                                           # (1, HID) -> (T, HID)
    b = hb_ref[...]                                           # (1, 1)   -> (T, 1)

    task_loss = jnp.zeros((NUM_TASKS, 1), jnp.float32)
    tp = None
    for step in range(NUM_STEPS):          # static unroll (NUM_STEPS=2)
        # support-set MSE gradient w.r.t. (W, b), closed-form
        serr = _head_eval(w, b, sup_feat) - sy                # (T, N_SUP)
        gw, gb = _head_grad(serr, sup_feat)
        # LSLR gradient-descent inner-loop update (lr init = update_lr)
        w = w - TASK_LR * gw
        b = b - TASK_LR * gb
        # multi-step-loss target evaluation with the updated head
        tp = _head_eval(w, b, tgt_feat)                       # (T, N_TGT)
        terr = tp - ty
        t_loss = jnp.sum(terr * terr, axis=-1, keepdims=True) * (1.0 / N_TGT)
        task_loss = task_loss + IMPORTANCE[step] * t_loss

    # ---- per-task pearson accuracy, folded in-kernel ----
    yt = ty - jnp.mean(ty, axis=-1, keepdims=True)
    yp = tp - jnp.mean(tp, axis=-1, keepdims=True)
    num = jnp.sum(yt * yp, axis=-1, keepdims=True)
    den = (jnp.sqrt(jnp.sum(yt * yt, axis=-1, keepdims=True)) *
           jnp.sqrt(jnp.sum(yp * yp, axis=-1, keepdims=True)) + 1e-12)
    acc = num / den                                           # (T, 1)

    # ---- single merged lane-dense output row per task ----
    out_ref[...] = jnp.zeros((NUM_TASKS, OUT_LANES), jnp.float32)
    out_ref[:, :N_TGT] = tp                                   # lanes 0..15: preds
    out_ref[:, LOSS_LANE:LOSS_LANE + 1] = task_loss           # lane 16: task loss
    out_ref[:, ACC_LANE:ACC_LANE + 1] = acc                   # lane 17: pearson


# ----------------------------- wrapper ---------------------------------------

def maml_pallas(params, support_x, support_y, target_x, target_y):
    # grid-free single invocation; every operand is a whole-array VMEM block
    # (total footprint ~170 KiB, no tiling / double-buffering needed).
    return pl.pallas_call(
        maml_kernel,
        out_shape=jax.ShapeDtypeStruct((NUM_TASKS, OUT_LANES), jnp.float32),
    )(support_x, support_y, target_x, target_y,
      params["w1"], params["b1"], params["g1"], params["be1"],
      params["w2"], params["b2"], params["g2"], params["be2"],
      params["head_w"], params["head_b"])


@jax.jit
def maml_forward(params, support_x, support_y, target_x, target_y):
    out = maml_pallas(params, support_x, support_y, target_x, target_y)  # (T, 128)

    per_task_preds = out[:, :N_TGT, None]         # (T, N_TGT, 1)
    task_losses = out[:, LOSS_LANE]               # (T,)
    accs = out[:, ACC_LANE]                       # (T,)

    losses = {
        "loss": jnp.mean(task_losses),
        "accuracy": jnp.mean(accs),
    }
    for i, v in enumerate(IMPORTANCE):
        losses[f"loss_importance_vector_{i}"] = jnp.float32(v)
    return losses, per_task_preds
    # TODO(synk): mixup branch (beta-sampled input mixing), BN running-stat
    # backup/restore, and NaN-filtering of per-task accuracies have no hot-path
    # compute and are omitted.


# ----------------------------- setup & main ----------------------------------

def init_params(key):
    ks = jax.random.split(key, 3)
    s1 = 1.0 / jnp.sqrt(jnp.float32(D_IN))
    s2 = 1.0 / jnp.sqrt(jnp.float32(HID))
    return dict(
        w1=jax.random.normal(ks[0], (D_IN, HID), jnp.float32) * s1,
        b1=jnp.zeros((1, HID), jnp.float32),
        g1=jnp.ones((1, HID), jnp.float32),
        be1=jnp.zeros((1, HID), jnp.float32),
        w2=jax.random.normal(ks[1], (HID, HID), jnp.float32) * s2,
        b2=jnp.zeros((1, HID), jnp.float32),
        g2=jnp.ones((1, HID), jnp.float32),
        be2=jnp.zeros((1, HID), jnp.float32),
        head_w=jax.random.normal(ks[2], (1, HID), jnp.float32) * s2,  # lane-dense row
        head_b=jnp.zeros((1, 1), jnp.float32),
    )


if __name__ == "__main__":
    key = jax.random.PRNGKey(0)
    kp, kx1, ky1, kx2, ky2 = jax.random.split(key, 5)
    params = init_params(kp)

    support_x = jax.random.normal(kx1, (NUM_TASKS, N_SUP, D_IN), jnp.float32)
    support_y = jax.random.normal(ky1, (NUM_TASKS, N_SUP), jnp.float32)
    target_x = jax.random.normal(kx2, (NUM_TASKS, N_TGT, D_IN), jnp.float32)
    target_y = jax.random.normal(ky2, (NUM_TASKS, N_TGT), jnp.float32)

    losses, per_task_target_preds = maml_forward(
        params, support_x, support_y, target_x, target_y)
    jax.block_until_ready((losses, per_task_target_preds))

    assert per_task_target_preds.shape == (NUM_TASKS, N_TGT, 1)
    assert jnp.isfinite(losses["loss"]).item()
    assert jnp.isfinite(losses["accuracy"]).item()
    print("KERNEL_OK")
</pallas_src>

<mosaic_0001>
module attributes {stable_mosaic.version = 11 : i64} {
  func.func @maml_kernel(%arg0: memref<2x16x128xf32, #tpu.memory_space<vmem>>, %arg1: memref<2x16xf32, #tpu.memory_space<vmem>>, %arg2: memref<2x16x128xf32, #tpu.memory_space<vmem>>, %arg3: memref<2x16xf32, #tpu.memory_space<vmem>>, %arg4: memref<128x128xf32, #tpu.memory_space<vmem>>, %arg5: memref<1x128xf32, #tpu.memory_space<vmem>>, %arg6: memref<1x128xf32, #tpu.memory_space<vmem>>, %arg7: memref<1x128xf32, #tpu.memory_space<vmem>>, %arg8: memref<128x128xf32, #tpu.memory_space<vmem>>, %arg9: memref<1x128xf32, #tpu.memory_space<vmem>>, %arg10: memref<1x128xf32, #tpu.memory_space<vmem>>, %arg11: memref<1x128xf32, #tpu.memory_space<vmem>>, %arg12: memref<1x128xf32, #tpu.memory_space<vmem>>, %arg13: memref<1x1xf32, #tpu.memory_space<vmem>>, %arg14: memref<2x128xf32, #tpu.memory_space<vmem>>) attributes {dimension_semantics = [], scalar_prefetch = 0 : i64, scratch_operands = 0 : i64, tpu.core_type = #tpu.core_type<tc>} {
    %c0 = arith.constant 0 : index
    %c0_0 = arith.constant 0 : index
    %c0_1 = arith.constant 0 : index
    %0 = vector.load %arg0[%c0, %c0_0, %c0_1] : memref<2x16x128xf32, #tpu.memory_space<vmem>>, vector<2x16x128xf32>
    %1 = vector.shape_cast %0 : vector<2x16x128xf32> to vector<32x128xf32>
    %c0_2 = arith.constant 0 : index
    %c0_3 = arith.constant 0 : index
    %c0_4 = arith.constant 0 : index
    %2 = vector.load %arg2[%c0_2, %c0_3, %c0_4] : memref<2x16x128xf32, #tpu.memory_space<vmem>>, vector<2x16x128xf32>
    %3 = vector.shape_cast %2 : vector<2x16x128xf32> to vector<32x128xf32>
    %4 = tpu.concatenate %1, %3 in 0 : vector<32x128xf32>, vector<32x128xf32> -> vector<64x128xf32>
    %c0_5 = arith.constant 0 : index
    %c0_6 = arith.constant 0 : index
    %5 = vector.load %arg4[%c0_5, %c0_6] : memref<128x128xf32, #tpu.memory_space<vmem>>, vector<128x128xf32>
    %cst = arith.constant dense<0.000000e+00> : vector<64x128xf32>
    %6 = tpu.matmul %4, %5, %cst {dimension_numbers = #tpu.dot_dimension_numbers<[1], [0], [0], [1], [0, 0, 1, 1], [], []>} : vector<64x128xf32>, vector<128x128xf32>, vector<64x128xf32> -> vector<64x128xf32>
    %c0_7 = arith.constant 0 : index
    %c0_8 = arith.constant 0 : index
    %7 = vector.load %arg5[%c0_7, %c0_8] : memref<1x128xf32, #tpu.memory_space<vmem>>, vector<1x128xf32>
    %8 = vector.broadcast %7 : vector<1x128xf32> to vector<64x128xf32>
    %9 = arith.addf %6, %8 : vector<64x128xf32>
    %c0_9 = arith.constant 0 : index
    %c0_10 = arith.constant 0 : index
    %10 = vector.load %arg6[%c0_9, %c0_10] : memref<1x128xf32, #tpu.memory_space<vmem>>, vector<1x128xf32>
    %c0_11 = arith.constant 0 : index
    %c0_12 = arith.constant 0 : index
    %11 = vector.load %arg7[%c0_11, %c0_12] : memref<1x128xf32, #tpu.memory_space<vmem>>, vector<1x128xf32>
    %cst_13 = arith.constant dense<0.000000e+00> : vector<64xf32>
    %12 = vector.multi_reduction <add>, %9, %cst_13 [1] : vector<64x128xf32> to vector<64xf32>
    %13 = vector.shape_cast %12 : vector<64xf32> to vector<64x1xf32>
    %cst_14 = arith.constant 1.280000e+02 : f32
    %14 = vector.broadcast %cst_14 : f32 to vector<64x1xf32>
    %15 = arith.divf %13, %14 : vector<64x1xf32>
    %16 = vector.broadcast %15 : vector<64x1xf32> to vector<64x128xf32>
    %17 = arith.subf %9, %16 : vector<64x128xf32>
    %18 = arith.mulf %17, %17 : vector<64x128xf32>
    %cst_15 = arith.constant dense<0.000000e+00> : vector<64xf32>
    %19 = vector.multi_reduction <add>, %18, %cst_15 [1] : vector<64x128xf32> to vector<64xf32>
    %20 = vector.shape_cast %19 : vector<64xf32> to vector<64x1xf32>
    %cst_16 = arith.constant 1.280000e+02 : f32
    %21 = vector.broadcast %cst_16 : f32 to vector<64x1xf32>
    %22 = arith.divf %20, %21 : vector<64x1xf32>
    %23 = vector.broadcast %15 : vector<64x1xf32> to vector<64x128xf32>
    %24 = arith.subf %9, %23 : vector<64x128xf32>
    %cst_17 = arith.constant 9.99999974E-6 : f32
    %25 = vector.broadcast %cst_17 : f32 to vector<64x1xf32>
    %26 = arith.addf %22, %25 : vector<64x1xf32>
    %27 = math.rsqrt %26 : vector<64x1xf32>
    %28 = vector.broadcast %27 : vector<64x1xf32> to vector<64x128xf32>
    %29 = arith.mulf %24, %28 : vector<64x128xf32>
    %30 = vector.broadcast %10 : vector<1x128xf32> to vector<64x128xf32>
    %31 = arith.mulf %29, %30 : vector<64x128xf32>
    %32 = vector.broadcast %11 : vector<1x128xf32> to vector<64x128xf32>
    %33 = arith.addf %31, %32 : vector<64x128xf32>
    %cst_18 = arith.constant 0.000000e+00 : f32
    %34 = vector.broadcast %cst_18 : f32 to vector<64x128xf32>
    %35 = arith.maximumf %33, %34 : vector<64x128xf32>
    %c0_19 = arith.constant 0 : index
    %c0_20 = arith.constant 0 : index
    %36 = vector.load %arg8[%c0_19, %c0_20] : memref<128x128xf32, #tpu.memory_space<vmem>>, vector<128x128xf32>
    %cst_21 = arith.constant dense<0.000000e+00> : vector<64x128xf32>
    %37 = tpu.matmul %35, %36, %cst_21 {dimension_numbers = #tpu.dot_dimension_numbers<[1], [0], [0], [1], [0, 0, 1, 1], [], []>} : vector<64x128xf32>, vector<128x128xf32>, vector<64x128xf32> -> vector<64x128xf32>
    %c0_22 = arith.constant 0 : index
    %c0_23 = arith.constant 0 : index
    %38 = vector.load %arg9[%c0_22, %c0_23] : memref<1x128xf32, #tpu.memory_space<vmem>>, vector<1x128xf32>
    %39 = vector.broadcast %38 : vector<1x128xf32> to vector<64x128xf32>
    %40 = arith.addf %37, %39 : vector<64x128xf32>
    %c0_24 = arith.constant 0 : index
    %c0_25 = arith.constant 0 : index
    %41 = vector.load %arg10[%c0_24, %c0_25] : memref<1x128xf32, #tpu.memory_space<vmem>>, vector<1x128xf32>
    %c0_26 = arith.constant 0 : index
    %c0_27 = arith.constant 0 : index
    %42 = vector.load %arg11[%c0_26, %c0_27] : memref<1x128xf32, #tpu.memory_space<vmem>>, vector<1x128xf32>
    %cst_28 = arith.constant dense<0.000000e+00> : vector<64xf32>
    %43 = vector.multi_reduction <add>, %40, %cst_28 [1] : vector<64x128xf32> to vector<64xf32>
    %44 = vector.shape_cast %43 : vector<64xf32> to vector<64x1xf32>
    %cst_29 = arith.constant 1.280000e+02 : f32
    %45 = vector.broadcast %cst_29 : f32 to vector<64x1xf32>
    %46 = arith.divf %44, %45 : vector<64x1xf32>
    %47 = vector.broadcast %46 : vector<64x1xf32> to vector<64x128xf32>
    %48 = arith.subf %40, %47 : vector<64x128xf32>
    %49 = arith.mulf %48, %48 : vector<64x128xf32>
    %cst_30 = arith.constant dense<0.000000e+00> : vector<64xf32>
    %50 = vector.multi_reduction <add>, %49, %cst_30 [1] : vector<64x128xf32> to vector<64xf32>
    %51 = vector.shape_cast %50 : vector<64xf32> to vector<64x1xf32>
    %cst_31 = arith.constant 1.280000e+02 : f32
    %52 = vector.broadcast %cst_31 : f32 to vector<64x1xf32>
    %53 = arith.divf %51, %52 : vector<64x1xf32>
    %54 = vector.broadcast %46 : vector<64x1xf32> to vector<64x128xf32>
    %55 = arith.subf %40, %54 : vector<64x128xf32>
    %cst_32 = arith.constant 9.99999974E-6 : f32
    %56 = vector.broadcast %cst_32 : f32 to vector<64x1xf32>
    %57 = arith.addf %53, %56 : vector<64x1xf32>
    %58 = math.rsqrt %57 : vector<64x1xf32>
    %59 = vector.broadcast %58 : vector<64x1xf32> to vector<64x128xf32>
    %60 = arith.mulf %55, %59 : vector<64x128xf32>
    %61 = vector.broadcast %41 : vector<1x128xf32> to vector<64x128xf32>
    %62 = arith.mulf %60, %61 : vector<64x128xf32>
    %63 = vector.broadcast %42 : vector<1x128xf32> to vector<64x128xf32>
    %64 = arith.addf %62, %63 : vector<64x128xf32>
    %cst_33 = arith.constant 0.000000e+00 : f32
    %65 = vector.broadcast %cst_33 : f32 to vector<64x128xf32>
    %66 = arith.maximumf %64, %65 : vector<64x128xf32>
    %67 = vector.extract_strided_slice %66 {offsets = [0, 0], sizes = [32, 128], strides = [1, 1]} : vector<64x128xf32> to vector<32x128xf32>
    %68 = vector.shape_cast %67 : vector<32x128xf32> to vector<2x16x128xf32>
    %69 = vector.extract_strided_slice %66 {offsets = [32, 0], sizes = [32, 128], strides = [1, 1]} : vector<64x128xf32> to vector<32x128xf32>
    %70 = vector.shape_cast %69 : vector<32x128xf32> to vector<2x16x128xf32>
    %c0_34 = arith.constant 0 : index
    %c0_35 = arith.constant 0 : index
    %71 = vector.load %arg1[%c0_34, %c0_35] : memref<2x16xf32, #tpu.memory_space<vmem>>, vector<2x16xf32>
    %c0_36 = arith.constant 0 : index
    %c0_37 = arith.constant 0 : index
    %72 = vector.load %arg3[%c0_36, %c0_37] : memref<2x16xf32, #tpu.memory_space<vmem>>, vector<2x16xf32>
    %c0_38 = arith.constant 0 : index
    %c0_39 = arith.constant 0 : index
    %73 = vector.load %arg12[%c0_38, %c0_39] : memref<1x128xf32, #tpu.memory_space<vmem>>, vector<1x128xf32>
    %c0_40 = arith.constant 0 : index
    %c0_41 = arith.constant 0 : index
    %74 = vector.load %arg13[%c0_40, %c0_41] : memref<1x1xf32, #tpu.memory_space<vmem>>, vector<1x1xf32>
    %cst_42 = arith.constant 0.000000e+00 : f32
    %75 = vector.broadcast %cst_42 : f32 to vector<2x1xf32>
    %76 = vector.shape_cast %73 : vector<1x128xf32> to vector<1x1x128xf32>
    %77 = vector.broadcast %76 : vector<1x1x128xf32> to vector<2x16x128xf32>
    %78 = arith.mulf %68, %77 : vector<2x16x128xf32>
    %cst_43 = arith.constant dense<0.000000e+00> : vector<2x16xf32>
    %79 = vector.multi_reduction <add>, %78, %cst_43 [2] : vector<2x16x128xf32> to vector<2x16xf32>
    %80 = vector.broadcast %74 : vector<1x1xf32> to vector<2x16xf32>
    %81 = arith.addf %79, %80 : vector<2x16xf32>
    %82 = arith.subf %81, %71 : vector<2x16xf32>
    %83 = vector.shape_cast %82 : vector<2x16xf32> to vector<2x1x16xf32>
    "tpu.trace_start"() <{level = 10 : i32, message = "tqn,tnh->tqh"}> : () -> ()
    %cst_44 = arith.constant dense<0.000000e+00> : vector<2x1x128xf32>
    %84 = tpu.matmul %83, %68, %cst_44 {dimension_numbers = #tpu.dot_dimension_numbers<[2], [1], [1], [2], [0, 0, 0, 1, 1, 2], [0], [0]>} : vector<2x1x16xf32>, vector<2x16x128xf32>, vector<2x1x128xf32> -> vector<2x1x128xf32>
    "tpu.trace_stop"() : () -> ()
    %85 = vector.shape_cast %84 : vector<2x1x128xf32> to vector<2x128xf32>
    %cst_45 = arith.constant 1.250000e-01 : f32
    %86 = vector.broadcast %cst_45 : f32 to vector<2x128xf32>
    %87 = arith.mulf %85, %86 : vector<2x128xf32>
    %cst_46 = arith.constant dense<0.000000e+00> : vector<2xf32>
    %88 = vector.multi_reduction <add>, %82, %cst_46 [1] : vector<2x16xf32> to vector<2xf32>
    %89 = vector.shape_cast %88 : vector<2xf32> to vector<2x1xf32>
    %cst_47 = arith.constant 1.250000e-01 : f32
    %90 = vector.broadcast %cst_47 : f32 to vector<2x1xf32>
    %91 = arith.mulf %89, %90 : vector<2x1xf32>
    %cst_48 = arith.constant 0.00999999977 : f32
    %92 = vector.broadcast %cst_48 : f32 to vector<2x128xf32>
    %93 = arith.mulf %92, %87 : vector<2x128xf32>
    %94 = vector.broadcast %73 : vector<1x128xf32> to vector<2x128xf32>
    %95 = arith.subf %94, %93 : vector<2x128xf32>
    %cst_49 = arith.constant 0.00999999977 : f32
    %96 = vector.broadcast %cst_49 : f32 to vector<2x1xf32>
    %97 = arith.mulf %96, %91 : vector<2x1xf32>
    %98 = vector.broadcast %74 : vector<1x1xf32> to vector<2x1xf32>
    %99 = arith.subf %98, %97 : vector<2x1xf32>
    %100 = vector.shape_cast %95 : vector<2x128xf32> to vector<2x1x128xf32>
    %101 = vector.broadcast %100 : vector<2x1x128xf32> to vector<2x16x128xf32>
    %102 = arith.mulf %70, %101 : vector<2x16x128xf32>
    %cst_50 = arith.constant dense<0.000000e+00> : vector<2x16xf32>
    %103 = vector.multi_reduction <add>, %102, %cst_50 [2] : vector<2x16x128xf32> to vector<2x16xf32>
    %104 = vector.broadcast %99 : vector<2x1xf32> to vector<2x16xf32>
    %105 = arith.addf %103, %104 : vector<2x16xf32>
    %106 = arith.subf %105, %72 : vector<2x16xf32>
    %107 = arith.mulf %106, %106 : vector<2x16xf32>
    %cst_51 = arith.constant dense<0.000000e+00> : vector<2xf32>
    %108 = vector.multi_reduction <add>, %107, %cst_51 [1] : vector<2x16xf32> to vector<2xf32>
    %109 = vector.shape_cast %108 : vector<2xf32> to vector<2x1xf32>
    %cst_52 = arith.constant 6.250000e-02 : f32
    %110 = vector.broadcast %cst_52 : f32 to vector<2x1xf32>
    %111 = arith.mulf %109, %110 : vector<2x1xf32>
    %cst_53 = arith.constant 5.000000e-01 : f32
    %112 = vector.broadcast %cst_53 : f32 to vector<2x1xf32>
    %113 = arith.mulf %112, %111 : vector<2x1xf32>
    %114 = arith.addf %75, %113 : vector<2x1xf32>
    %115 = vector.shape_cast %95 : vector<2x128xf32> to vector<2x1x128xf32>
    %116 = vector.broadcast %115 : vector<2x1x128xf32> to vector<2x16x128xf32>
    %117 = arith.mulf %68, %116 : vector<2x16x128xf32>
    %cst_54 = arith.constant dense<0.000000e+00> : vector<2x16xf32>
    %118 = vector.multi_reduction <add>, %117, %cst_54 [2] : vector<2x16x128xf32> to vector<2x16xf32>
    %119 = vector.broadcast %99 : vector<2x1xf32> to vector<2x16xf32>
    %120 = arith.addf %118, %119 : vector<2x16xf32>
    %121 = arith.subf %120, %71 : vector<2x16xf32>
    %122 = vector.shape_cast %121 : vector<2x16xf32> to vector<2x1x16xf32>
    "tpu.trace_start"() <{level = 10 : i32, message = "tqn,tnh->tqh"}> : () -> ()
    %cst_55 = arith.constant dense<0.000000e+00> : vector<2x1x128xf32>
    %123 = tpu.matmul %122, %68, %cst_55 {dimension_numbers = #tpu.dot_dimension_numbers<[2], [1], [1], [2], [0, 0, 0, 1, 1, 2], [0], [0]>} : vector<2x1x16xf32>, vector<2x16x128xf32>, vector<2x1x128xf32> -> vector<2x1x128xf32>
    "tpu.trace_stop"() : () -> ()
    %124 = vector.shape_cast %123 : vector<2x1x128xf32> to vector<2x128xf32>
    %cst_56 = arith.constant 1.250000e-01 : f32
    %125 = vector.broadcast %cst_56 : f32 to vector<2x128xf32>
    %126 = arith.mulf %124, %125 : vector<2x128xf32>
    %cst_57 = arith.constant dense<0.000000e+00> : vector<2xf32>
    %127 = vector.multi_reduction <add>, %121, %cst_57 [1] : vector<2x16xf32> to vector<2xf32>
    %128 = vector.shape_cast %127 : vector<2xf32> to vector<2x1xf32>
    %cst_58 = arith.constant 1.250000e-01 : f32
    %129 = vector.broadcast %cst_58 : f32 to vector<2x1xf32>
    %130 = arith.mulf %128, %129 : vector<2x1xf32>
    %cst_59 = arith.constant 0.00999999977 : f32
    %131 = vector.broadcast %cst_59 : f32 to vector<2x128xf32>
    %132 = arith.mulf %131, %126 : vector<2x128xf32>
    %133 = arith.subf %95, %132 : vector<2x128xf32>
    %cst_60 = arith.constant 0.00999999977 : f32
    %134 = vector.broadcast %cst_60 : f32 to vector<2x1xf32>
    %135 = arith.mulf %134, %130 : vector<2x1xf32>
    %136 = arith.subf %99, %135 : vector<2x1xf32>
    %137 = vector.shape_cast %133 : vector<2x128xf32> to vector<2x1x128xf32>
    %138 = vector.broadcast %137 : vector<2x1x128xf32> to vector<2x16x128xf32>
    %139 = arith.mulf %70, %138 : vector<2x16x128xf32>
    %cst_61 = arith.constant dense<0.000000e+00> : vector<2x16xf32>
    %140 = vector.multi_reduction <add>, %139, %cst_61 [2] : vector<2x16x128xf32> to vector<2x16xf32>
    %141 = vector.broadcast %136 : vector<2x1xf32> to vector<2x16xf32>
    %142 = arith.addf %140, %141 : vector<2x16xf32>
    %143 = arith.subf %142, %72 : vector<2x16xf32>
    %144 = arith.mulf %143, %143 : vector<2x16xf32>
    %cst_62 = arith.constant dense<0.000000e+00> : vector<2xf32>
    %145 = vector.multi_reduction <add>, %144, %cst_62 [1] : vector<2x16xf32> to vector<2xf32>
    %146 = vector.shape_cast %145 : vector<2xf32> to vector<2x1xf32>
    %cst_63 = arith.constant 6.250000e-02 : f32
    %147 = vector.broadcast %cst_63 : f32 to vector<2x1xf32>
    %148 = arith.mulf %146, %147 : vector<2x1xf32>
    %cst_64 = arith.constant 5.000000e-01 : f32
    %149 = vector.broadcast %cst_64 : f32 to vector<2x1xf32>
    %150 = arith.mulf %149, %148 : vector<2x1xf32>
    %151 = arith.addf %114, %150 : vector<2x1xf32>
    %cst_65 = arith.constant dense<0.000000e+00> : vector<2xf32>
    %152 = vector.multi_reduction <add>, %72, %cst_65 [1] : vector<2x16xf32> to vector<2xf32>
    %153 = vector.shape_cast %152 : vector<2xf32> to vector<2x1xf32>
    %cst_66 = arith.constant 1.600000e+01 : f32
    %154 = vector.broadcast %cst_66 : f32 to vector<2x1xf32>
    %155 = arith.divf %153, %154 : vector<2x1xf32>
    %156 = vector.broadcast %155 : vector<2x1xf32> to vector<2x16xf32>
    %157 = arith.subf %72, %156 : vector<2x16xf32>
    %cst_67 = arith.constant dense<0.000000e+00> : vector<2xf32>
    %158 = vector.multi_reduction <add>, %142, %cst_67 [1] : vector<2x16xf32> to vector<2xf32>
    %159 = vector.shape_cast %158 : vector<2xf32> to vector<2x1xf32>
    %cst_68 = arith.constant 1.600000e+01 : f32
    %160 = vector.broadcast %cst_68 : f32 to vector<2x1xf32>
    %161 = arith.divf %159, %160 : vector<2x1xf32>
    %162 = vector.broadcast %161 : vector<2x1xf32> to vector<2x16xf32>
    %163 = arith.subf %142, %162 : vector<2x16xf32>
    %164 = arith.mulf %157, %163 : vector<2x16xf32>
    %cst_69 = arith.constant dense<0.000000e+00> : vector<2xf32>
    %165 = vector.multi_reduction <add>, %164, %cst_69 [1] : vector<2x16xf32> to vector<2xf32>
    %166 = vector.shape_cast %165 : vector<2xf32> to vector<2x1xf32>
    %167 = arith.mulf %157, %157 : vector<2x16xf32>
    %cst_70 = arith.constant dense<0.000000e+00> : vector<2xf32>
    %168 = vector.multi_reduction <add>, %167, %cst_70 [1] : vector<2x16xf32> to vector<2xf32>
    %169 = vector.shape_cast %168 : vector<2xf32> to vector<2x1xf32>
    %170 = math.sqrt %169 : vector<2x1xf32>
    %171 = arith.mulf %163, %163 : vector<2x16xf32>
    %cst_71 = arith.constant dense<0.000000e+00> : vector<2xf32>
    %172 = vector.multi_reduction <add>, %171, %cst_71 [1] : vector<2x16xf32> to vector<2xf32>
    %173 = vector.shape_cast %172 : vector<2xf32> to vector<2x1xf32>
    %174 = math.sqrt %173 : vector<2x1xf32>
    %175 = arith.mulf %170, %174 : vector<2x1xf32>
    %cst_72 = arith.constant 9.99999996E-13 : f32
    %176 = vector.broadcast %cst_72 : f32 to vector<2x1xf32>
    %177 = arith.addf %175, %176 : vector<2x1xf32>
    %178 = arith.divf %166, %177 : vector<2x1xf32>
    %cst_73 = arith.constant 0.000000e+00 : f32
    %179 = vector.broadcast %cst_73 : f32 to vector<2x128xf32>
    %c0_74 = arith.constant 0 : index
    %c0_75 = arith.constant 0 : index
    %180 = vector.load %arg14[%c0_74, %c0_75] : memref<2x128xf32, #tpu.memory_space<vmem>>, vector<2x128xf32>
    tpu.vector_store %arg14[%c0_74, %c0_75], %179 {strides = array<i32>} : memref<2x128xf32, #tpu.memory_space<vmem>>, vector<2x128xf32>,
    %c0_76 = arith.constant 0 : index
    %c0_77 = arith.constant 0 : index
    %181 = vector.load %arg14[%c0_76, %c0_77] : memref<2x128xf32, #tpu.memory_space<vmem>>, vector<2x16xf32>
    tpu.vector_store %arg14[%c0_76, %c0_77], %142 {strides = array<i32>} : memref<2x128xf32, #tpu.memory_space<vmem>>, vector<2x16xf32>,
    %c0_78 = arith.constant 0 : index
    %c16 = arith.constant 16 : index
    %182 = vector.load %arg14[%c0_78, %c16] : memref<2x128xf32, #tpu.memory_space<vmem>>, vector<2x1xf32>
    tpu.vector_store %arg14[%c0_78, %c16], %151 {strides = array<i32>} : memref<2x128xf32, #tpu.memory_space<vmem>>, vector<2x1xf32>,
    %c0_79 = arith.constant 0 : index
    %c17 = arith.constant 17 : index
    %183 = vector.load %arg14[%c0_79, %c17] : memref<2x128xf32, #tpu.memory_space<vmem>>, vector<2x1xf32>
    tpu.vector_store %arg14[%c0_79, %c17], %178 {strides = array<i32>} : memref<2x128xf32, #tpu.memory_space<vmem>>, vector<2x1xf32>,
    return
  }
}

</mosaic_0001>

<llo_original>
// kernel: maml_forward.1
$region0: #{maml_forward.1}
  #allocation0 [shape = 'u32[]', space=smem, size = 0x4, offset = 0x4, fixed_abs, tag = 'smem constant byte address 0x4 - core index']
  #allocation1 [shape = 'u32[144,128]{1,0:T(1,128)}', space=vmem, size = 0x12000, scoped, tag = 'internal scratch']
  #allocation2 [shape = 'f32[1,1]{1,0:T(1,128)S(1)}', space=vmem, size = 0x200, scoped, tag = 'scoped memory for maml_forward.1']
  %s0 = inlined_call_operand.hbm [shape: f32[2,16,128], index: 0, kind: input, shape index: {}]
  %s1 = inlined_call_operand.vmem [shape: f32[2,16], index: 1, kind: input, shape index: {}]
  %s2 = inlined_call_operand.hbm [shape: f32[2,16,128], index: 2, kind: input, shape index: {}]
  %s3 = inlined_call_operand.hbm [shape: f32[2,16], index: 3, kind: input, shape index: {}]
  %s4 = inlined_call_operand.hbm [shape: f32[128,128], index: 4, kind: input, shape index: {}]
  %s5 = inlined_call_operand.vmem [shape: f32[1,128], index: 5, kind: input, shape index: {}]
  %s6 = inlined_call_operand.vmem [shape: f32[1,128], index: 6, kind: input, shape index: {}]
  %s7 = inlined_call_operand.vmem [shape: f32[1,128], index: 7, kind: input, shape index: {}]
  %s8 = inlined_call_operand.hbm [shape: f32[128,128], index: 8, kind: input, shape index: {}]
  %s9 = inlined_call_operand.vmem [shape: f32[1,128], index: 9, kind: input, shape index: {}]
  %s10 = inlined_call_operand.vmem [shape: f32[1,128], index: 10, kind: input, shape index: {}]
  %s11 = inlined_call_operand.vmem [shape: f32[1,128], index: 11, kind: input, shape index: {}]
  %s12 = inlined_call_operand.vmem [shape: f32[1,128], index: 12, kind: input, shape index: {}]
  %s13 = inlined_call_operand.<no memory space> [shape: f32[1,1], index: 13, kind: input, shape index: {}]
  %s14 = inlined_call_operand.vmem [shape: f32[2,128], index: 14, kind: output, shape index: {}]
  %s15 = sld [smem:[#allocation0]]
  $region86: #{maml_forward.1} parent=0
    _
  %s17 = ssub.s32 1, %s15
  %s18 = scalar_select 0, %s17, %s15
  %v19 = vstv %s13
  %20 = vst [vmem:[#allocation2] sm:$0x1] %v19
  $region1: #{maml_forward.1} parent=0
    #allocation3 [shape = 'u8[16384]{0}', space=vmem, size = 0x4000, scoped, tag = 'input window, operand 0, single buffered']
    #allocation4 [shape = 's32[1]{0}', space=sflag, size = 0x4, scoped, tag = 'scoped memory for maml_forward.1']
    #allocation5 [shape = 'u8[16384]{0}', space=vmem, size = 0x4000, scoped, tag = 'input window, operand 2, single buffered']
    #allocation6 [shape = 's32[1]{0}', space=sflag, size = 0x4, scoped, tag = 'scoped memory for maml_forward.1']
    #allocation7 [shape = 'u8[1024]{0}', space=vmem, size = 0x400, scoped, tag = 'input window, operand 3, single buffered']
    #allocation8 [shape = 'u8[65536]{0}', space=vmem, size = 0x10000, scoped, tag = 'input window, operand 4, single buffered']
    #allocation9 [shape = 's32[1]{0}', space=sflag, size = 0x4, scoped, tag = 'scoped memory for maml_forward.1']
    #allocation10 [shape = 'u8[65536]{0}', space=vmem, size = 0x10000, scoped, tag = 'input window, operand 8, single buffered']
    %21 = vsyncpa [#allocation4], 0
    %22 = vsyncpa [#allocation6], 0
    %23 = vsyncpa [#allocation9], 0
    // Predicated region
    $region2: #{maml_forward.1} parent=1 // pred_check
      _
    $region3: #{maml_forward.1} parent=1 // pred_check_branch
      %25 = sbr.rel (0) target = $region5
    $region4: #{maml_forward.1} parent=1 // pred_region
      %s27 = ssub.s32 512, 512
      %28 = vsyncadd [#allocation4], %s27
      %s29 = sshll.u32 [#allocation3], 4
      %s30 = int_to_ptr.vmem [resolvable:$true] %s29
      %35 = dma.hbm_to_vmem [thread:$0]  %s0, 512, %s30, [#allocation4], 128, 128, 8
    $region5: #{maml_forward.1} parent=1 // pred_fallthru
      _
    // Predicated region
    $region6: #{maml_forward.1} parent=1 // pred_check
      _
    $region7: #{maml_forward.1} parent=1 // pred_check_branch
      %37 = sbr.rel (0) target = $region9
    $region8: #{maml_forward.1} parent=1 // pred_region
      _
    $region9: #{maml_forward.1} parent=1 // pred_fallthru
      _
    // Predicated region
    $region10: #{maml_forward.1} parent=1 // pred_check
      _
    $region11: #{maml_forward.1} parent=1 // pred_check_branch
      %39 = sbr.rel (0) target = $region13
    $region12: #{maml_forward.1} parent=1 // pred_region
      %s41 = ssub.s32 512, 512
      %42 = vsyncadd [#allocation6], %s41
      %s43 = sshll.u32 [#allocation5], 4
      %s44 = int_to_ptr.vmem [resolvable:$true] %s43
      %49 = dma.hbm_to_vmem [thread:$0]  %s2, 512, %s44, [#allocation6], 128, 128, 8
    $region13: #{maml_forward.1} parent=1 // pred_fallthru
      _
    // Predicated region
    $region14: #{maml_forward.1} parent=1 // pred_check
      _
    $region15: #{maml_forward.1} parent=1 // pred_check_branch
      %51 = sbr.rel (0) target = $region17
    $region16: #{maml_forward.1} parent=1 // pred_region
      %s53 = ssub.s32 32, 32
      %54 = vsyncadd [#allocation6], %s53
      %s56 = sshll.u32 [#allocation7], 4
      %s57 = int_to_ptr.vmem [resolvable:$true] %s56
      %59 = dma.hbm_to_vmem [thread:$0]  %s3, 32, %s57, [#allocation6]
    $region17: #{maml_forward.1} parent=1 // pred_fallthru
      _
    // Predicated region
    $region18: #{maml_forward.1} parent=1 // pred_check
      _
    $region19: #{maml_forward.1} parent=1 // pred_check_branch
      %61 = sbr.rel (0) target = $region21
    $region20: #{maml_forward.1} parent=1 // pred_region
      %s63 = ssub.s32 2048, 2048
      %64 = vsyncadd [#allocation9], %s63
      %s65 = sshll.u32 [#allocation8], 4
      %s66 = int_to_ptr.vmem [resolvable:$true] %s65
      %71 = dma.hbm_to_vmem [thread:$0]  %s4, 2048, %s66, [#allocation9], 128, 128, 8
    $region21: #{maml_forward.1} parent=1 // pred_fallthru
      _
    // Predicated region
    $region22: #{maml_forward.1} parent=1 // pred_check
      _
    $region23: #{maml_forward.1} parent=1 // pred_check_branch
      %73 = sbr.rel (0) target = $region25
    $region24: #{maml_forward.1} parent=1 // pred_region
      _
    $region25: #{maml_forward.1} parent=1 // pred_fallthru
      _
    // Predicated region
    $region26: #{maml_forward.1} parent=1 // pred_check
      _
    $region27: #{maml_forward.1} parent=1 // pred_check_branch
      %75 = sbr.rel (0) target = $region29
    $region28: #{maml_forward.1} parent=1 // pred_region
      _
    $region29: #{maml_forward.1} parent=1 // pred_fallthru
      _
    // Predicated region
    $region30: #{maml_forward.1} parent=1 // pred_check
      _
    $region31: #{maml_forward.1} parent=1 // pred_check_branch
      %77 = sbr.rel (0) target = $region33
    $region32: #{maml_forward.1} parent=1 // pred_region
      _
    $region33: #{maml_forward.1} parent=1 // pred_fallthru
      _
    // Predicated region
    $region34: #{maml_forward.1} parent=1 // pred_check
      _
    $region35: #{maml_forward.1} parent=1 // pred_check_branch
      %79 = sbr.rel (0) target = $region37
    $region36: #{maml_forward.1} parent=1 // pred_region
      %s81 = ssub.s32 2048, 2048
      %82 = vsyncadd [#allocation9], %s81
      %s83 = sshll.u32 [#allocation10], 4
      %s84 = int_to_ptr.vmem [resolvable:$true] %s83
      %89 = dma.hbm_to_vmem [thread:$0]  %s8, 2048, %s84, [#allocation9], 128, 128, 8
    $region37: #{maml_forward.1} parent=1 // pred_fallthru
      _
    // Predicated region
    $region38: #{maml_forward.1} parent=1 // pred_check
      _
    $region39: #{maml_forward.1} parent=1 // pred_check_branch
      %91 = sbr.rel (0) target = $region41
    $region40: #{maml_forward.1} parent=1 // pred_region
      _
    $region41: #{maml_forward.1} parent=1 // pred_fallthru
      _
    // Predicated region
    $region42: #{maml_forward.1} parent=1 // pred_check
      _
    $region43: #{maml_forward.1} parent=1 // pred_check_branch
      %93 = sbr.rel (0) target = $region45
    $region44: #{maml_forward.1} parent=1 // pred_region
      _
    $region45: #{maml_forward.1} parent=1 // pred_fallthru
      _
    // Predicated region
    $region46: #{maml_forward.1} parent=1 // pred_check
      _
    $region47: #{maml_forward.1} parent=1 // pred_check_branch
      %95 = sbr.rel (0) target = $region49
    $region48: #{maml_forward.1} parent=1 // pred_region
      _
    $region49: #{maml_forward.1} parent=1 // pred_fallthru
      _
    // Predicated region
    $region50: #{maml_forward.1} parent=1 // pred_check
      _
    $region51: #{maml_forward.1} parent=1 // pred_check_branch
      %97 = sbr.rel (0) target = $region53
    $region52: #{maml_forward.1} parent=1 // pred_region
      _
    $region53: #{maml_forward.1} parent=1 // pred_fallthru
      _
    // Predicated region
    $region54: #{maml_forward.1} parent=1 // pred_check
      _
    $region55: #{maml_forward.1} parent=1 // pred_check_branch
      %99 = sbr.rel (0) target = $region57
    $region56: #{maml_forward.1} parent=1 // pred_region
      _
    $region57: #{maml_forward.1} parent=1 // pred_fallthru
      _
    // Predicated region
    $region58: #{maml_forward.1} parent=1 // pred_check
      _
    $region59: #{maml_forward.1} parent=1 // pred_check_branch
      %101 = sbr.rel (0) target = $region61
    $region60: #{maml_forward.1} parent=1 // pred_region
      %102 = dma.done [#allocation4], 512
    $region61: #{maml_forward.1} parent=1 // pred_fallthru
      _
    // Predicated region
    $region62: #{maml_forward.1} parent=1 // pred_check
      _
    $region63: #{maml_forward.1} parent=1 // pred_check_branch
      %104 = sbr.rel (0) target = $region65
    $region64: #{maml_forward.1} parent=1 // pred_region
      %105 = dma.done [#allocation6], 512
    $region65: #{maml_forward.1} parent=1 // pred_fallthru
      _
    // Predicated region
    $region66: #{maml_forward.1} parent=1 // pred_check
      _
    $region67: #{maml_forward.1} parent=1 // pred_check_branch
      %107 = sbr.rel (0) target = $region69
    $region68: #{maml_forward.1} parent=1 // pred_region
      %108 = dma.done [#allocation6], 32
    $region69: #{maml_forward.1} parent=1 // pred_fallthru
      _
    // Predicated region
    $region70: #{maml_forward.1} parent=1 // pred_check
      _
    $region71: #{maml_forward.1} parent=1 // pred_check_branch
      %110 = sbr.rel (0) target = $region73
    $region72: #{maml_forward.1} parent=1 // pred_region
      %111 = dma.done [#allocation9], 2048
    $region73: #{maml_forward.1} parent=1 // pred_fallthru
      _
    // Predicated region
    $region74: #{maml_forward.1} parent=1 // pred_check
      _
    $region75: #{maml_forward.1} parent=1 // pred_check_branch
      %113 = sbr.rel (0) target = $region77
    $region76: #{maml_forward.1} parent=1 // pred_region
      %114 = dma.done [#allocation9], 2048
    $region77: #{maml_forward.1} parent=1 // pred_fallthru
      _
    %v115 = vld [vmem:[#allocation3] sm:$0xff]
    %v116 = vld [vmem:[#allocation3 + $0x8] sm:$0xff]
    %v117 = vld [vmem:[#allocation3 + $0x10] sm:$0xff]
    %v118 = vld [vmem:[#allocation3 + $0x18] sm:$0xff]
    %v119 = vld [vmem:[#allocation5] sm:$0xff]
    %v120 = vld [vmem:[#allocation5 + $0x8] sm:$0xff]
    %v121 = vld [vmem:[#allocation5 + $0x10] sm:$0xff]
    %v122 = vld [vmem:[#allocation5 + $0x18] sm:$0xff]
    %v123 = vld [vmem:[#allocation8] sm:$0xff]
    %v124 = vld [vmem:[#allocation8 + $0x8] sm:$0xff]
    %v125 = vld [vmem:[#allocation8 + $0x10] sm:$0xff]
    %v126 = vld [vmem:[#allocation8 + $0x18] sm:$0xff]
    %v127 = vld [vmem:[#allocation8 + $0x20] sm:$0xff]
    %v128 = vld [vmem:[#allocation8 + $0x28] sm:$0xff]
    %v129 = vld [vmem:[#allocation8 + $0x30] sm:$0xff]
    %v130 = vld [vmem:[#allocation8 + $0x38] sm:$0xff]
    %v131 = vld [vmem:[#allocation8 + $0x40] sm:$0xff]
    %v132 = vld [vmem:[#allocation8 + $0x48] sm:$0xff]
    %v133 = vld [vmem:[#allocation8 + $0x50] sm:$0xff]
    %v134 = vld [vmem:[#allocation8 + $0x58] sm:$0xff]
    %v135 = vld [vmem:[#allocation8 + $0x60] sm:$0xff]
    %v136 = vld [vmem:[#allocation8 + $0x68] sm:$0xff]
    %v137 = vld [vmem:[#allocation8 + $0x70] sm:$0xff]
    %v138 = vld [vmem:[#allocation8 + $0x78] sm:$0xff]
    %v139 = vld [vmem:[%s5] sm:$0x1]
    %v141 = vlaneseq
    %v142 = vshrl.u32 %v141, 7
    %v143 = vsub.s32 0, %v142
    %v144 = vrot.slane %v139, %v143
    %146 = vmatprep.subr.mxu0 0.0
    %147 = vmatpush1.msra.mxu0 %v123
    %148 = vmatprep.subr.mxu0 0.0
    %149 = vmatpush1.msra.mxu0 %v124
    %150 = vmatprep.subr.mxu0 0.0
    %151 = vmatpush1.msra.mxu0 %v125
    %152 = vmatprep.subr.mxu0 0.0
    %153 = vmatpush1.msra.mxu0 %v126
    %154 = vmatprep.subr.mxu0 0.0
    %155 = vmatpush1.msra.mxu0 %v127
    %156 = vmatprep.subr.mxu0 0.0
    %157 = vmatpush1.msra.mxu0 %v128
    %158 = vmatprep.subr.mxu0 0.0
    %159 = vmatpush1.msra.mxu0 %v129
    %160 = vmatprep.subr.mxu0 0.0
    %161 = vmatpush1.msra.mxu0 %v130
    %162 = vmatprep.subr.mxu0 0.0
    %163 = vmatpush1.msra.mxu0 %v131
    %164 = vmatprep.subr.mxu0 0.0
    %165 = vmatpush1.msra.mxu0 %v132
    %166 = vmatprep.subr.mxu0 0.0
    %167 = vmatpush1.msra.mxu0 %v133
    %168 = vmatprep.subr.mxu0 0.0
    %169 = vmatpush1.msra.mxu0 %v134
    %170 = vmatprep.subr.mxu0 0.0
    %171 = vmatpush1.msra.mxu0 %v135
    %172 = vmatprep.subr.mxu0 0.0
    %173 = vmatpush1.msra.mxu0 %v136
    %174 = vmatprep.subr.mxu0 0.0
    %175 = vmatpush1.msra.mxu0 %v137
    %176 = vmatprep.subr.mxu0 0.0
    %177 = vmatpush1.msra.mxu0 %v138
    %178 = vmatprep.subr.mxu0 0.0
    %179 = vmatpush1.msra.mxu0 0.0
    %180 = vmatprep.subr.mxu0 0.0
    %181 = vmatpush1.msra.mxu0 0.0
    %182 = vmatprep.subr.mxu0 0.0
    %183 = vmatpush1.msra.mxu0 0.0
    %184 = vmatprep.subr.mxu0 0.0
    %185 = vmatpush1.msra.mxu0 0.0
    %186 = vmatprep.subr.mxu0 0.0
    %187 = vmatpush1.msra.mxu0 0.0
    %188 = vmatprep.subr.mxu0 0.0
    %189 = vmatpush1.msra.mxu0 0.0
    %190 = vmatprep.subr.mxu0 0.0
    %191 = vmatpush1.msra.mxu0 0.0
    %192 = vmatprep.subr.mxu0 0.0
    %193 = vmatpush1.msra.mxu0 0.0
    %194 = vmatprep.subr.mxu0 0.0
    %195 = vmatpush1.msra.mxu0 0.0
    %196 = vmatprep.subr.mxu0 0.0
    %197 = vmatpush1.msra.mxu0 0.0
    %198 = vmatprep.subr.mxu0 0.0
    %199 = vmatpush1.msra.mxu0 0.0
    %200 = vmatprep.subr.mxu0 0.0
    %201 = vmatpush1.msra.mxu0 0.0
    %202 = vmatprep.subr.mxu0 0.0
    %203 = vmatpush1.msra.mxu0 0.0
    %204 = vmatprep.subr.mxu0 0.0
    %205 = vmatpush1.msra.mxu0 0.0
    %206 = vmatprep.subr.mxu0 0.0
    %207 = vmatpush1.msra.mxu0 0.0
    %208 = vmatprep.subr.mxu0 0.0
    %209 = vmatpush1.msra.mxu0 0.0
    %210 = vmatprep.mubr.f32.mxu0 0.0
    %211 = vmatmul.mubr.f32.gmra.mrb[0].mxu0 %v115
    %v212 = vpop.f32.mrb[0].mxu0
    %v213 = vadd.f32 %v144, %v212
    %v214 = vpop.f32.mrb[0].mxu0
    %215 = vmatprep.mubr.f32.mxu0 0.0
    %216 = vmatmul.mubr.f32.gmra.mrb[0].mxu0 %v116
    %v217 = vpop.f32.mrb[0].mxu0
    %v218 = vadd.f32 %v144, %v217
    %v219 = vpop.f32.mrb[0].mxu0
    %220 = vmatprep.mubr.f32.mxu0 0.0
    %221 = vmatmul.mubr.f32.gmra.mrb[0].mxu0 %v117
    %v222 = vpop.f32.mrb[0].mxu0
    %v223 = vadd.f32 %v144, %v222
    %v224 = vpop.f32.mrb[0].mxu0
    %225 = vmatprep.mubr.f32.mxu0 0.0
    %226 = vmatmul.mubr.f32.gmra.mrb[0].mxu0 %v118
    %v227 = vpop.f32.mrb[0].mxu0
    %v228 = vadd.f32 %v144, %v227
    %v229 = vpop.f32.mrb[0].mxu0
    %230 = vmatprep.mubr.f32.mxu0 0.0
    %231 = vmatmul.mubr.f32.gmra.mrb[0].mxu0 %v119
    %v232 = vpop.f32.mrb[0].mxu0
    %v233 = vadd.f32 %v144, %v232
    %v234 = vpop.f32.mrb[0].mxu0
    %235 = vmatprep.mubr.f32.mxu0 0.0
    %236 = vmatmul.mubr.f32.gmra.mrb[0].mxu0 %v120
    %v237 = vpop.f32.mrb[0].mxu0
    %v238 = vadd.f32 %v144, %v237
    %v239 = vpop.f32.mrb[0].mxu0
    %240 = vmatprep.mubr.f32.mxu0 0.0
    %241 = vmatmul.mubr.f32.gmra.mrb[0].mxu0 %v121
    %v242 = vpop.f32.mrb[0].mxu0
    %v243 = vadd.f32 %v144, %v242
    %v244 = vpop.f32.mrb[0].mxu0
    %245 = vmatprep.mubr.f32.mxu0 0.0
    %246 = vmatmul.mubr.f32.gmra.mrb[0].mxu0 %v122
    %v247 = vpop.f32.mrb[0].mxu0
    %v248 = vadd.f32 %v144, %v247
    %v249 = vpop.f32.mrb[0].mxu0
    %250 = vdwg.mxu0
    %v251 = vld [vmem:[%s6] sm:$0x1]
    %v252 = vld [vmem:[%s7] sm:$0x1]
    %253 = vadd.xlane.f32.xlu0 %v213
    %v254 = vpop.xlane.xlu0 %253
    %255 = vadd.xlane.f32.xlu0 %v218
    %v256 = vpop.xlane.xlu0 %255
    %257 = vadd.xlane.f32.xlu0 %v223
    %v258 = vpop.xlane.xlu0 %257
    %259 = vadd.xlane.f32.xlu0 %v228
    %v260 = vpop.xlane.xlu0 %259
    %261 = vadd.xlane.f32.xlu0 %v233
    %v262 = vpop.xlane.xlu0 %261
    %263 = vadd.xlane.f32.xlu0 %v238
    %v264 = vpop.xlane.xlu0 %263
    %265 = vadd.xlane.f32.xlu0 %v243
    %v266 = vpop.xlane.xlu0 %265
    %267 = vadd.xlane.f32.xlu0 %v248
    %v268 = vpop.xlane.xlu0 %267
    %v269 = vrcp.pop 128.0
    %v270 = vmul.f32 %v254, %v269
    %v271 = vmul.f32 %v256, %v269
    %v272 = vmul.f32 %v258, %v269
    %v273 = vmul.f32 %v260, %v269
    %v274 = vmul.f32 %v262, %v269
    %v275 = vmul.f32 %v264, %v269
    %v276 = vmul.f32 %v266, %v269
    %v277 = vmul.f32 %v268, %v269
    %v278 = vsub.f32 %v213, %v270
    %v279 = vsub.f32 %v218, %v271
    %v280 = vsub.f32 %v223, %v272
    %v281 = vsub.f32 %v228, %v273
    %v282 = vsub.f32 %v233, %v274
    %v283 = vsub.f32 %v238, %v275
    %v284 = vsub.f32 %v243, %v276
    %v285 = vsub.f32 %v248, %v277
    %v286 = vmul.f32 %v278, %v278
    %v287 = vmul.f32 %v279, %v279
    %v288 = vmul.f32 %v280, %v280
    %v289 = vmul.f32 %v281, %v281
    %v290 = vmul.f32 %v282, %v282
    %v291 = vmul.f32 %v283, %v283
    %v292 = vmul.f32 %v284, %v284
    %v293 = vmul.f32 %v285, %v285
    %294 = vadd.xlane.f32.xlu0 %v286
    %v295 = vpop.xlane.xlu0 %294
    %296 = vadd.xlane.f32.xlu0 %v287
    %v297 = vpop.xlane.xlu0 %296
    %298 = vadd.xlane.f32.xlu0 %v288
    %v299 = vpop.xlane.xlu0 %298
    %300 = vadd.xlane.f32.xlu0 %v289
    %v301 = vpop.xlane.xlu0 %300
    %302 = vadd.xlane.f32.xlu0 %v290
    %v303 = vpop.xlane.xlu0 %302
    %304 = vadd.xlane.f32.xlu0 %v291
    %v305 = vpop.xlane.xlu0 %304
    %306 = vadd.xlane.f32.xlu0 %v292
    %v307 = vpop.xlane.xlu0 %306
    %308 = vadd.xlane.f32.xlu0 %v293
    %v309 = vpop.xlane.xlu0 %308
    %v310 = vmul.f32 %v295, %v269
    %v311 = vmul.f32 %v297, %v269
    %v312 = vmul.f32 %v299, %v269
    %v313 = vmul.f32 %v301, %v269
    %v314 = vmul.f32 %v303, %v269
    %v315 = vmul.f32 %v305, %v269
    %v316 = vmul.f32 %v307, %v269
    %v317 = vmul.f32 %v309, %v269
    %v318 = vadd.f32 %v310, 1e-05
    %v319 = vadd.f32 %v311, 1e-05
    %v320 = vadd.f32 %v312, 1e-05
    %v321 = vadd.f32 %v313, 1e-05
    %v322 = vadd.f32 %v314, 1e-05
    %v323 = vadd.f32 %v315, 1e-05
    %v324 = vadd.f32 %v316, 1e-05
    %v325 = vadd.f32 %v317, 1e-05
    %v326 = vrsqrt.pop %v318
    %v327 = vrsqrt.pop %v319
    %v328 = vrsqrt.pop %v320
    %v329 = vrsqrt.pop %v321
    %v330 = vrsqrt.pop %v322
    %v331 = vrsqrt.pop %v323
    %v332 = vrsqrt.pop %v324
    %v333 = vrsqrt.pop %v325
    %v334 = vmul.f32 %v278, %v326
    %v335 = vmul.f32 %v279, %v327
    %v336 = vmul.f32 %v280, %v328
    %v337 = vmul.f32 %v281, %v329
    %v338 = vmul.f32 %v282, %v330
    %v339 = vmul.f32 %v283, %v331
    %v340 = vmul.f32 %v284, %v332
    %v341 = vmul.f32 %v285, %v333
    %v343 = vlaneseq
    %v344 = vshrl.u32 %v343, 7
    %v345 = vsub.s32 0, %v344
    %v346 = vrot.slane %v251, %v345
    %v348 = vmul.f32 %v334, %v346
    %v349 = vmul.f32 %v335, %v346
    %v350 = vmul.f32 %v336, %v346
    %v351 = vmul.f32 %v337, %v346
    %v352 = vmul.f32 %v338, %v346
    %v353 = vmul.f32 %v339, %v346
    %v354 = vmul.f32 %v340, %v346
    %v355 = vmul.f32 %v341, %v346
    %v357 = vlaneseq
    %v358 = vshrl.u32 %v357, 7
    %v359 = vsub.s32 0, %v358
    %v360 = vrot.slane %v252, %v359
    %v362 = vadd.f32 %v348, %v360
    %v363 = vadd.f32 %v349, %v360
    %v364 = vadd.f32 %v350, %v360
    %v365 = vadd.f32 %v351, %v360
    %v366 = vadd.f32 %v352, %v360
    %v367 = vadd.f32 %v353, %v360
    %v368 = vadd.f32 %v354, %v360
    %v369 = vadd.f32 %v355, %v360
    %v370 = vmax.f32 %v362, 0.0
    %v371 = vmax.f32 %v363, 0.0
    %v372 = vmax.f32 %v364, 0.0
    %v373 = vmax.f32 %v365, 0.0
    %v374 = vmax.f32 %v366, 0.0
    %v375 = vmax.f32 %v367, 0.0
    %v376 = vmax.f32 %v368, 0.0
    %v377 = vmax.f32 %v369, 0.0
    %v378 = vld [vmem:[#allocation10] sm:$0xff]
    %v379 = vld [vmem:[#allocation10 + $0x8] sm:$0xff]
    %v380 = vld [vmem:[#allocation10 + $0x10] sm:$0xff]
    %v381 = vld [vmem:[#allocation10 + $0x18] sm:$0xff]
    %v382 = vld [vmem:[#allocation10 + $0x20] sm:$0xff]
    %v383 = vld [vmem:[#allocation10 + $0x28] sm:$0xff]
    %v384 = vld [vmem:[#allocation10 + $0x30] sm:$0xff]
    %v385 = vld [vmem:[#allocation10 + $0x38] sm:$0xff]
    %v386 = vld [vmem:[#allocation10 + $0x40] sm:$0xff]
    %v387 = vld [vmem:[#allocation10 + $0x48] sm:$0xff]
    %v388 = vld [vmem:[#allocation10 + $0x50] sm:$0xff]
    %v389 = vld [vmem:[#allocation10 + $0x58] sm:$0xff]
    %v390 = vld [vmem:[#allocation10 + $0x60] sm:$0xff]
    %v391 = vld [vmem:[#allocation10 + $0x68] sm:$0xff]
    %v392 = vld [vmem:[#allocation10 + $0x70] sm:$0xff]
    %v393 = vld [vmem:[#allocation10 + $0x78] sm:$0xff]
    %v394 = vld [vmem:[%s9] sm:$0x1]
    %v396 = vlaneseq
    %v397 = vshrl.u32 %v396, 7
    %v398 = vsub.s32 0, %v397
    %v399 = vrot.slane %v394, %v398
    %401 = vmatprep.subr.mxu0 0.0
    %402 = vmatpush1.msra.mxu0 %v378
    %403 = vmatprep.subr.mxu0 0.0
    %404 = vmatpush1.msra.mxu0 %v379
    %405 = vmatprep.subr.mxu0 0.0
    %406 = vmatpush1.msra.mxu0 %v380
    %407 = vmatprep.subr.mxu0 0.0
    %408 = vmatpush1.msra.mxu0 %v381
    %409 = vmatprep.subr.mxu0 0.0
    %410 = vmatpush1.msra.mxu0 %v382
    %411 = vmatprep.subr.mxu0 0.0
    %412 = vmatpush1.msra.mxu0 %v383
    %413 = vmatprep.subr.mxu0 0.0
    %414 = vmatpush1.msra.mxu0 %v384
    %415 = vmatprep.subr.mxu0 0.0
    %416 = vmatpush1.msra.mxu0 %v385
    %417 = vmatprep.subr.mxu0 0.0
    %418 = vmatpush1.msra.mxu0 %v386
    %419 = vmatprep.subr.mxu0 0.0
    %420 = vmatpush1.msra.mxu0 %v387
    %421 = vmatprep.subr.mxu0 0.0
    %422 = vmatpush1.msra.mxu0 %v388
    %423 = vmatprep.subr.mxu0 0.0
    %424 = vmatpush1.msra.mxu0 %v389
    %425 = vmatprep.subr.mxu0 0.0
    %426 = vmatpush1.msra.mxu0 %v390
    %427 = vmatprep.subr.mxu0 0.0
    %428 = vmatpush1.msra.mxu0 %v391
    %429 = vmatprep.subr.mxu0 0.0
    %430 = vmatpush1.msra.mxu0 %v392
    %431 = vmatprep.subr.mxu0 0.0
    %432 = vmatpush1.msra.mxu0 %v393
    %433 = vmatprep.subr.mxu0 0.0
    %434 = vmatpush1.msra.mxu0 0.0
    %435 = vmatprep.subr.mxu0 0.0
    %436 = vmatpush1.msra.mxu0 0.0
    %437 = vmatprep.subr.mxu0 0.0
    %438 = vmatpush1.msra.mxu0 0.0
    %439 = vmatprep.subr.mxu0 0.0
    %440 = vmatpush1.msra.mxu0 0.0
    %441 = vmatprep.subr.mxu0 0.0
    %442 = vmatpush1.msra.mxu0 0.0
    %443 = vmatprep.subr.mxu0 0.0
    %444 = vmatpush1.msra.mxu0 0.0
    %445 = vmatprep.subr.mxu0 0.0
    %446 = vmatpush1.msra.mxu0 0.0
    %447 = vmatprep.subr.mxu0 0.0
    %448 = vmatpush1.msra.mxu0 0.0
    %449 = vmatprep.subr.mxu0 0.0
    %450 = vmatpush1.msra.mxu0 0.0
    %451 = vmatprep.subr.mxu0 0.0
    %452 = vmatpush1.msra.mxu0 0.0
    %453 = vmatprep.subr.mxu0 0.0
    %454 = vmatpush1.msra.mxu0 0.0
    %455 = vmatprep.subr.mxu0 0.0
    %456 = vmatpush1.msra.mxu0 0.0
    %457 = vmatprep.subr.mxu0 0.0
    %458 = vmatpush1.msra.mxu0 0.0
    %459 = vmatprep.subr.mxu0 0.0
    %460 = vmatpush1.msra.mxu0 0.0
    %461 = vmatprep.subr.mxu0 0.0
    %462 = vmatpush1.msra.mxu0 0.0
    %463 = vmatprep.subr.mxu0 0.0
    %464 = vmatpush1.msra.mxu0 0.0
    %465 = vmatprep.mubr.f32.mxu0 0.0
    %466 = vmatmul.mubr.f32.gmra.mrb[0].mxu0 %v370
    %v467 = vpop.f32.mrb[0].mxu0
    %v468 = vadd.f32 %v399, %v467
    %v469 = vpop.f32.mrb[0].mxu0
    %470 = vmatprep.mubr.f32.mxu0 0.0
    %471 = vmatmul.mubr.f32.gmra.mrb[0].mxu0 %v371
    %v472 = vpop.f32.mrb[0].mxu0
    %v473 = vadd.f32 %v399, %v472
    %v474 = vpop.f32.mrb[0].mxu0
    %475 = vmatprep.mubr.f32.mxu0 0.0
    %476 = vmatmul.mubr.f32.gmra.mrb[0].mxu0 %v372
    %v477 = vpop.f32.mrb[0].mxu0
    %v478 = vadd.f32 %v399, %v477
    %v479 = vpop.f32.mrb[0].mxu0
    %480 = vmatprep.mubr.f32.mxu0 0.0
    %481 = vmatmul.mubr.f32.gmra.mrb[0].mxu0 %v373
    %v482 = vpop.f32.mrb[0].mxu0
    %v483 = vadd.f32 %v399, %v482
    %v484 = vpop.f32.mrb[0].mxu0
    %485 = vmatprep.mubr.f32.mxu0 0.0
    %486 = vmatmul.mubr.f32.gmra.mrb[0].mxu0 %v374
    %v487 = vpop.f32.mrb[0].mxu0
    %v488 = vadd.f32 %v399, %v487
    %v489 = vpop.f32.mrb[0].mxu0
    %490 = vmatprep.mubr.f32.mxu0 0.0
    %491 = vmatmul.mubr.f32.gmra.mrb[0].mxu0 %v375
    %v492 = vpop.f32.mrb[0].mxu0
    %v493 = vadd.f32 %v399, %v492
    %v494 = vpop.f32.mrb[0].mxu0
    %495 = vmatprep.mubr.f32.mxu0 0.0
    %496 = vmatmul.mubr.f32.gmra.mrb[0].mxu0 %v376
    %v497 = vpop.f32.mrb[0].mxu0
    %v498 = vadd.f32 %v399, %v497
    %v499 = vpop.f32.mrb[0].mxu0
    %500 = vmatprep.mubr.f32.mxu0 0.0
    %501 = vmatmul.mubr.f32.gmra.mrb[0].mxu0 %v377
    %v502 = vpop.f32.mrb[0].mxu0
    %v503 = vadd.f32 %v399, %v502
    %v504 = vpop.f32.mrb[0].mxu0
    %505 = vdwg.mxu0
    %v506 = vld [vmem:[%s10] sm:$0x1]
    %v507 = vld [vmem:[%s11] sm:$0x1]
    %508 = vadd.xlane.f32.xlu0 %v468
    %v509 = vpop.xlane.xlu0 %508
    %510 = vadd.xlane.f32.xlu0 %v473
    %v511 = vpop.xlane.xlu0 %510
    %512 = vadd.xlane.f32.xlu0 %v478
    %v513 = vpop.xlane.xlu0 %512
    %514 = vadd.xlane.f32.xlu0 %v483
    %v515 = vpop.xlane.xlu0 %514
    %516 = vadd.xlane.f32.xlu0 %v488
    %v517 = vpop.xlane.xlu0 %516
    %518 = vadd.xlane.f32.xlu0 %v493
    %v519 = vpop.xlane.xlu0 %518
    %520 = vadd.xlane.f32.xlu0 %v498
    %v521 = vpop.xlane.xlu0 %520
    %522 = vadd.xlane.f32.xlu0 %v503
    %v523 = vpop.xlane.xlu0 %522
    %v524 = vmul.f32 %v509, %v269
    %v525 = vmul.f32 %v511, %v269
    %v526 = vmul.f32 %v513, %v269
    %v527 = vmul.f32 %v515, %v269
    %v528 = vmul.f32 %v517, %v269
    %v529 = vmul.f32 %v519, %v269
    %v530 = vmul.f32 %v521, %v269
    %v531 = vmul.f32 %v523, %v269
    %v532 = vsub.f32 %v468, %v524
    %v533 = vsub.f32 %v473, %v525
    %v534 = vsub.f32 %v478, %v526
    %v535 = vsub.f32 %v483, %v527
    %v536 = vsub.f32 %v488, %v528
    %v537 = vsub.f32 %v493, %v529
    %v538 = vsub.f32 %v498, %v530
    %v539 = vsub.f32 %v503, %v531
    %v540 = vmul.f32 %v532, %v532
    %v541 = vmul.f32 %v533, %v533
    %v542 = vmul.f32 %v534, %v534
    %v543 = vmul.f32 %v535, %v535
    %v544 = vmul.f32 %v536, %v536
    %v545 = vmul.f32 %v537, %v537
    %v546 = vmul.f32 %v538, %v538
    %v547 = vmul.f32 %v539, %v539
    %548 = vadd.xlane.f32.xlu0 %v540
    %v549 = vpop.xlane.xlu0 %548
    %550 = vadd.xlane.f32.xlu0 %v541
    %v551 = vpop.xlane.xlu0 %550
    %552 = vadd.xlane.f32.xlu0 %v542
    %v553 = vpop.xlane.xlu0 %552
    %554 = vadd.xlane.f32.xlu0 %v543
    %v555 = vpop.xlane.xlu0 %554
    %556 = vadd.xlane.f32.xlu0 %v544
    %v557 = vpop.xlane.xlu0 %556
    %558 = vadd.xlane.f32.xlu0 %v545
    %v559 = vpop.xlane.xlu0 %558
    %560 = vadd.xlane.f32.xlu0 %v546
    %v561 = vpop.xlane.xlu0 %560
    %562 = vadd.xlane.f32.xlu0 %v547
    %v563 = vpop.xlane.xlu0 %562
    %v564 = vmul.f32 %v549, %v269
    %v565 = vmul.f32 %v551, %v269
    %v566 = vmul.f32 %v553, %v269
    %v567 = vmul.f32 %v555, %v269
    %v568 = vmul.f32 %v557, %v269
    %v569 = vmul.f32 %v559, %v269
    %v570 = vmul.f32 %v561, %v269
    %v571 = vmul.f32 %v563, %v269
    %v572 = vadd.f32 %v564, 1e-05
    %v573 = vadd.f32 %v565, 1e-05
    %v574 = vadd.f32 %v566, 1e-05
    %v575 = vadd.f32 %v567, 1e-05
    %v576 = vadd.f32 %v568, 1e-05
    %v577 = vadd.f32 %v569, 1e-05
    %v578 = vadd.f32 %v570, 1e-05
    %v579 = vadd.f32 %v571, 1e-05
    %v580 = vrsqrt.pop %v572
    %v581 = vrsqrt.pop %v573
    %v582 = vrsqrt.pop %v574
    %v583 = vrsqrt.pop %v575
    %v584 = vrsqrt.pop %v576
    %v585 = vrsqrt.pop %v577
    %v586 = vrsqrt.pop %v578
    %v587 = vrsqrt.pop %v579
    %v588 = vmul.f32 %v532, %v580
    %v589 = vmul.f32 %v533, %v581
    %v590 = vmul.f32 %v534, %v582
    %v591 = vmul.f32 %v535, %v583
    %v592 = vmul.f32 %v536, %v584
    %v593 = vmul.f32 %v537, %v585
    %v594 = vmul.f32 %v538, %v586
    %v595 = vmul.f32 %v539, %v587
    %v597 = vlaneseq
    %v598 = vshrl.u32 %v597, 7
    %v599 = vsub.s32 0, %v598
    %v600 = vrot.slane %v506, %v599
    %v602 = vmul.f32 %v588, %v600
    %v603 = vmul.f32 %v589, %v600
    %v604 = vmul.f32 %v590, %v600
    %v605 = vmul.f32 %v591, %v600
    %v606 = vmul.f32 %v592, %v600
    %v607 = vmul.f32 %v593, %v600
    %v608 = vmul.f32 %v594, %v600
    %v609 = vmul.f32 %v595, %v600
    %v611 = vlaneseq
    %v612 = vshrl.u32 %v611, 7
    %v613 = vsub.s32 0, %v612
    %v614 = vrot.slane %v507, %v613
    %v616 = vadd.f32 %v602, %v614
    %v617 = vadd.f32 %v603, %v614
    %v618 = vadd.f32 %v604, %v614
    %v619 = vadd.f32 %v605, %v614
    %v620 = vadd.f32 %v606, %v614
    %v621 = vadd.f32 %v607, %v614
    %v622 = vadd.f32 %v608, %v614
    %v623 = vadd.f32 %v609, %v614
    %v624 = vmax.f32 %v616, 0.0
    %v625 = vmax.f32 %v617, 0.0
    %v626 = vmax.f32 %v618, 0.0
    %v627 = vmax.f32 %v619, 0.0
    %v628 = vmax.f32 %v620, 0.0
    %v629 = vmax.f32 %v621, 0.0
    %v630 = vmax.f32 %v622, 0.0
    %v631 = vmax.f32 %v623, 0.0
    %v632 = vld [vmem:[%s1] sm:$0x3]
    %v633 = vld [vmem:[#allocation7] sm:$0x3]
    %v634 = vld [vmem:[%s12] sm:$0x1]
    %v635 = vld [vmem:[#allocation2] sm:$0x1]
    %v637 = vlaneseq
    %v638 = vshrl.u32 %v637, 7
    %v639 = vsub.s32 0, %v638
    %v640 = vrot.slane %v634, %v639
    %v642 = vmul.f32 %v624, %v640
    %v643 = vmul.f32 %v625, %v640
    %v644 = vmul.f32 %v626, %v640
    %v645 = vmul.f32 %v627, %v640
    %646 = vadd.xlane.f32.xlu0 %v642
    %v647 = vpop.xlane.xlu0 %646
    %648 = vadd.xlane.f32.xlu0 %v643
    %v649 = vpop.xlane.xlu0 %648
    %650 = vadd.xlane.f32.xlu0 %v644
    %v651 = vpop.xlane.xlu0 %650
    %652 = vadd.xlane.f32.xlu0 %v645
    %v653 = vpop.xlane.xlu0 %652
    %v655 = vlaneseq
    %v656 = vshrl.u32 %v655, 7
    %v657 = vsub.s32 0, %v656
    %v658 = vrot.slane %v635, %v657
    %659 = vset.pattern.permute.xlu0 0
    %660 = vperm.xlu0 %659, %v658
    %v661 = vpop.permute.xlu0 %660
    %v663 = vadd.f32 %v647, %v661
    %v664 = vadd.f32 %v649, %v661
    %v665 = vadd.f32 %v651, %v661
    %v666 = vadd.f32 %v653, %v661
    %v668 = vlaneseq
    %v669 = vshrl.u32 %v668, 7
    %v670 = vsub.s32 0, %v669
    %v671 = vrot.slane %v632, %v670
    %673 = vbcast.lane.b32.xlu0 %v671, 256
    %v674 = vpop.permute.xlu0 %673
    %s676 = sor.u32 256, 8
    %677 = vbcast.lane.b32.xlu0 %v671, %s676
    %v678 = vpop.permute.xlu0 %677
    %v679 = vlaneseq
    %v680 = vshrl.u32 %v679, 7
    %v681 = vsub.s32 1, %v680
    %v682 = vrot.slane %v632, %v681
    %684 = vbcast.lane.b32.xlu0 %v682, 256
    %v685 = vpop.permute.xlu0 %684
    %s687 = sor.u32 256, 8
    %688 = vbcast.lane.b32.xlu0 %v682, %s687
    %v689 = vpop.permute.xlu0 %688
    %v694 = vsub.f32 %v663, %v674
    %v695 = vsub.f32 %v664, %v678
    %v696 = vsub.f32 %v665, %v685
    %v697 = vsub.f32 %v666, %v689
    %700 = vset.pattern.permute.xlu0 0
    %701 = vperm.xlu0 %700, %v694
    %v702 = vpop.permute.xlu0 %701
    %703 = vset.pattern.permute.xlu0 0
    %704 = vperm.xlu0 %703, %v695
    %v705 = vpop.permute.xlu0 %704
    %v706 = vlaneseq
    %v707 = vand.u32 %v706, 127
    %v708 = vlaneseq
    %v709 = vshrl.u32 %v708, 7
    %v710 = vsub.s32 %v707, %v709
    %v711 = vrot.slane %v702, %v710
    %v712 = vadd.s32 %v707, 4294967288
    %v713 = vlaneseq
    %v714 = vshrl.u32 %v713, 7
    %v715 = vsub.s32 %v712, %v714
    %v716 = vrot.slane %v705, %v715
    %vm717 = vcmask 130112
    %v718 = vsel %vm717, %v716, %v711
    %vm719 = vcmask 130048
    %v720 = vsel %vm719, %v718, 0
    %722 = vmatprep.subr.mxu0 0.0
    %723 = vmatpush1.msra.mxu0 %v624
    %724 = vmatprep.subr.mxu0 0.0
    %725 = vmatpush1.msra.mxu0 %v625
    %726 = vmatprep.subr.mxu0 0.0
    %727 = vmatpush1.msra.mxu0 0.0
    %728 = vmatprep.subr.mxu0 0.0
    %729 = vmatpush1.msra.mxu0 0.0
    %730 = vmatprep.subr.mxu0 0.0
    %731 = vmatpush1.msra.mxu0 0.0
    %732 = vmatprep.subr.mxu0 0.0
    %733 = vmatpush1.msra.mxu0 0.0
    %734 = vmatprep.subr.mxu0 0.0
    %735 = vmatpush1.msra.mxu0 0.0
    %736 = vmatprep.subr.mxu0 0.0
    %737 = vmatpush1.msra.mxu0 0.0
    %738 = vmatprep.subr.mxu0 0.0
    %739 = vmatpush1.msra.mxu0 0.0
    %740 = vmatprep.subr.mxu0 0.0
    %741 = vmatpush1.msra.mxu0 0.0
    %742 = vmatprep.subr.mxu0 0.0
    %743 = vmatpush1.msra.mxu0 0.0
    %744 = vmatprep.subr.mxu0 0.0
    %745 = vmatpush1.msra.mxu0 0.0
    %746 = vmatprep.subr.mxu0 0.0
    %747 = vmatpush1.msra.mxu0 0.0
    %748 = vmatprep.subr.mxu0 0.0
    %749 = vmatpush1.msra.mxu0 0.0
    %750 = vmatprep.subr.mxu0 0.0
    %751 = vmatpush1.msra.mxu0 0.0
    %752 = vmatprep.subr.mxu0 0.0
    %753 = vmatpush1.msra.mxu0 0.0
    %754 = vmatprep.subr.mxu0 0.0
    %755 = vmatpush1.msra.mxu0 0.0
    %756 = vmatprep.subr.mxu0 0.0
    %757 = vmatpush1.msra.mxu0 0.0
    %758 = vmatprep.subr.mxu0 0.0
    %759 = vmatpush1.msra.mxu0 0.0
    %760 = vmatprep.subr.mxu0 0.0
    %761 = vmatpush1.msra.mxu0 0.0
    %762 = vmatprep.subr.mxu0 0.0
    %763 = vmatpush1.msra.mxu0 0.0
    %764 = vmatprep.subr.mxu0 0.0
    %765 = vmatpush1.msra.mxu0 0.0
    %766 = vmatprep.subr.mxu0 0.0
    %767 = vmatpush1.msra.mxu0 0.0
    %768 = vmatprep.subr.mxu0 0.0
    %769 = vmatpush1.msra.mxu0 0.0
    %770 = vmatprep.subr.mxu0 0.0
    %771 = vmatpush1.msra.mxu0 0.0
    %772 = vmatprep.subr.mxu0 0.0
    %773 = vmatpush1.msra.mxu0 0.0
    %774 = vmatprep.subr.mxu0 0.0
    %775 = vmatpush1.msra.mxu0 0.0
    %776 = vmatprep.subr.mxu0 0.0
    %777 = vmatpush1.msra.mxu0 0.0
    %778 = vmatprep.subr.mxu0 0.0
    %779 = vmatpush1.msra.mxu0 0.0
    %780 = vmatprep.subr.mxu0 0.0
    %781 = vmatpush1.msra.mxu0 0.0
    %782 = vmatprep.subr.mxu0 0.0
    %783 = vmatpush1.msra.mxu0 0.0
    %784 = vmatprep.subr.mxu0 0.0
    %785 = vmatpush1.msra.mxu0 0.0
    %786 = vmatprep.mubr.f32.mxu0 0.0
    %787 = vmatmul.mubr.f32.gmra.mrb[0].mxu0 %v720
    %v788 = vpop.f32.mrb[0].mxu0
    %v789 = vadd.f32 0.0, %v788
    %v790 = vpop.f32.mrb[0].mxu0
    %791 = vdwg.mxu0
    %794 = vset.pattern.permute.xlu0 0
    %795 = vperm.xlu0 %794, %v696
    %v796 = vpop.permute.xlu0 %795
    %797 = vset.pattern.permute.xlu0 0
    %798 = vperm.xlu0 %797, %v697
    %v799 = vpop.permute.xlu0 %798
    %v800 = vlaneseq
    %v801 = vshrl.u32 %v800, 7
    %v802 = vsub.s32 %v707, %v801
    %v803 = vrot.slane %v796, %v802
    %v804 = vlaneseq
    %v805 = vshrl.u32 %v804, 7
    %v806 = vsub.s32 %v712, %v805
    %v807 = vrot.slane %v799, %v806
    %v808 = vsel %vm717, %v807, %v803
    %v809 = vsel %vm719, %v808, 0
    %811 = vmatprep.subr.mxu0 0.0
    %812 = vmatpush1.msra.mxu0 %v626
    %813 = vmatprep.subr.mxu0 0.0
    %814 = vmatpush1.msra.mxu0 %v627
    %815 = vmatprep.subr.mxu0 0.0
    %816 = vmatpush1.msra.mxu0 0.0
    %817 = vmatprep.subr.mxu0 0.0
    %818 = vmatpush1.msra.mxu0 0.0
    %819 = vmatprep.subr.mxu0 0.0
    %820 = vmatpush1.msra.mxu0 0.0
    %821 = vmatprep.subr.mxu0 0.0
    %822 = vmatpush1.msra.mxu0 0.0
    %823 = vmatprep.subr.mxu0 0.0
    %824 = vmatpush1.msra.mxu0 0.0
    %825 = vmatprep.subr.mxu0 0.0
    %826 = vmatpush1.msra.mxu0 0.0
    %827 = vmatprep.subr.mxu0 0.0
    %828 = vmatpush1.msra.mxu0 0.0
    %829 = vmatprep.subr.mxu0 0.0
    %830 = vmatpush1.msra.mxu0 0.0
    %831 = vmatprep.subr.mxu0 0.0
    %832 = vmatpush1.msra.mxu0 0.0
    %833 = vmatprep.subr.mxu0 0.0
    %834 = vmatpush1.msra.mxu0 0.0
    %835 = vmatprep.subr.mxu0 0.0
    %836 = vmatpush1.msra.mxu0 0.0
    %837 = vmatprep.subr.mxu0 0.0
    %838 = vmatpush1.msra.mxu0 0.0
    %839 = vmatprep.subr.mxu0 0.0
    %840 = vmatpush1.msra.mxu0 0.0
    %841 = vmatprep.subr.mxu0 0.0
    %842 = vmatpush1.msra.mxu0 0.0
    %843 = vmatprep.subr.mxu0 0.0
    %844 = vmatpush1.msra.mxu0 0.0
    %845 = vmatprep.subr.mxu0 0.0
    %846 = vmatpush1.msra.mxu0 0.0
    %847 = vmatprep.subr.mxu0 0.0
    %848 = vmatpush1.msra.mxu0 0.0
    %849 = vmatprep.subr.mxu0 0.0
    %850 = vmatpush1.msra.mxu0 0.0
    %851 = vmatprep.subr.mxu0 0.0
    %852 = vmatpush1.msra.mxu0 0.0
    %853 = vmatprep.subr.mxu0 0.0
    %854 = vmatpush1.msra.mxu0 0.0
    %855 = vmatprep.subr.mxu0 0.0
    %856 = vmatpush1.msra.mxu0 0.0
    %857 = vmatprep.subr.mxu0 0.0
    %858 = vmatpush1.msra.mxu0 0.0
    %859 = vmatprep.subr.mxu0 0.0
    %860 = vmatpush1.msra.mxu0 0.0
    %861 = vmatprep.subr.mxu0 0.0
    %862 = vmatpush1.msra.mxu0 0.0
    %863 = vmatprep.subr.mxu0 0.0
    %864 = vmatpush1.msra.mxu0 0.0
    %865 = vmatprep.subr.mxu0 0.0
    %866 = vmatpush1.msra.mxu0 0.0
    %867 = vmatprep.subr.mxu0 0.0
    %868 = vmatpush1.msra.mxu0 0.0
    %869 = vmatprep.subr.mxu0 0.0
    %870 = vmatpush1.msra.mxu0 0.0
    %871 = vmatprep.subr.mxu0 0.0
    %872 = vmatpush1.msra.mxu0 0.0
    %873 = vmatprep.subr.mxu0 0.0
    %874 = vmatpush1.msra.mxu0 0.0
    %875 = vmatprep.mubr.f32.mxu0 0.0
    %876 = vmatmul.mubr.f32.gmra.mrb[0].mxu0 %v809
    %v877 = vpop.f32.mrb[0].mxu0
    %v878 = vadd.f32 0.0, %v877
    %v879 = vpop.f32.mrb[0].mxu0
    %880 = vdwg.mxu0
    %v881 = vmul.f32 %v789, 0.125
    %v882 = vmul.f32 %v878, 0.125
    %vm883 = vcmask 1041409
    %v884 = vsel %vm883, %v808, %v718
    %vm886 = vcmask 123904
    %v887 = vsel %vm886, %v884, 0.0
    %888 = vadd.xlane.f32.xlu0 %v887
    %v889 = vpop.xlane.xlu0 %888
    %v890 = vmul.f32 %v889, 0.125
    %v891 = vmul.f32 %v881, 0.01
    %v892 = vmul.f32 %v882, 0.01
    %v895 = vrot.slane %v892, 7
    %v896 = vsel %vm883, %v895, %v891
    %v898 = vsub.f32 %v640, %v896
    %v899 = vmul.f32 %v890, 0.01
    %v901 = vsub.f32 %v658, %v899
    %v904 = vunpack.c.l.s4 1966171168
    %v905 = vunpack.c.0.s8 %v904
    %v906 = vlaneseq
    %v907 = vshrl.u32 %v906, 7
    %v908 = vsub.s32 %v905, %v907
    %v909 = vrot.slane %v898, %v908
    %v910 = vcombine.high %v909, %v909
    %v912 = vunpack.c.l.s4 1966171168
    %v913 = vunpack.c.0.s8 %v912
    %v914 = vlaneseq
    %v915 = vshrl.u32 %v914, 7
    %v916 = vsub.s32 %v913, %v915
    %v917 = vrot.slane %v909, %v916
    %v919 = vunpack.c.l.s4 1966171168
    %v920 = vunpack.c.0.s8 %v919
    %v921 = vlaneseq
    %v922 = vshrl.u32 %v921, 7
    %v923 = vsub.s32 %v920, %v922
    %v924 = vrot.slane %v910, %v923
    %v925 = vlaneseq
    %v926 = vshrl.u32 %v925, 7
    %v927 = vsub.s32 0, %v926
    %v928 = vrot.slane %v917, %v927
    %v929 = vlaneseq
    %v930 = vshrl.u32 %v929, 7
    %v931 = vsub.s32 0, %v930
    %v932 = vrot.slane %v924, %v931
    %v935 = vmul.f32 %v628, %v928
    %v936 = vmul.f32 %v629, %v928
    %v937 = vmul.f32 %v630, %v932
    %v938 = vmul.f32 %v631, %v932
    %939 = vadd.xlane.f32.xlu0 %v935
    %v940 = vpop.xlane.xlu0 %939
    %941 = vadd.xlane.f32.xlu0 %v936
    %v942 = vpop.xlane.xlu0 %941
    %943 = vadd.xlane.f32.xlu0 %v937
    %v944 = vpop.xlane.xlu0 %943
    %945 = vadd.xlane.f32.xlu0 %v938
    %v946 = vpop.xlane.xlu0 %945
    %948 = vset.pattern.permute.xlu0 0
    %949 = vperm.xlu0 %948, %v901
    %v950 = vpop.permute.xlu0 %949
    %v951 = vlaneseq
    %v952 = vshrl.u32 %v951, 7
    %v953 = vsub.s32 0, %v952
    %v954 = vrot.slane %v950, %v953
    %v955 = vlaneseq
    %v956 = vshrl.u32 %v955, 7
    %v957 = vsub.s32 1, %v956
    %v958 = vrot.slane %v950, %v957
    %v961 = vadd.f32 %v940, %v954
    %v962 = vadd.f32 %v942, %v954
    %v963 = vadd.f32 %v944, %v958
    %v964 = vadd.f32 %v946, %v958
    %v966 = vlaneseq
    %v967 = vshrl.u32 %v966, 7
    %v968 = vsub.s32 0, %v967
    %v969 = vrot.slane %v633, %v968
    %971 = vbcast.lane.b32.xlu0 %v969, 256
    %v972 = vpop.permute.xlu0 %971
    %s974 = sor.u32 256, 8
    %975 = vbcast.lane.b32.xlu0 %v969, %s974
    %v976 = vpop.permute.xlu0 %975
    %v977 = vlaneseq
    %v978 = vshrl.u32 %v977, 7
    %v979 = vsub.s32 1, %v978
    %v980 = vrot.slane %v633, %v979
    %982 = vbcast.lane.b32.xlu0 %v980, 256
    %v983 = vpop.permute.xlu0 %982
    %s985 = sor.u32 256, 8
    %986 = vbcast.lane.b32.xlu0 %v980, %s985
    %v987 = vpop.permute.xlu0 %986
    %v992 = vsub.f32 %v961, %v972
    %v993 = vsub.f32 %v962, %v976
    %v994 = vsub.f32 %v963, %v983
    %v995 = vsub.f32 %v964, %v987
    %v996 = vmul.f32 %v992, %v992
    %v997 = vmul.f32 %v993, %v993
    %v998 = vmul.f32 %v994, %v994
    %v999 = vmul.f32 %v995, %v995
    %1004 = vset.pattern.permute.xlu0 0
    %1005 = vperm.xlu0 %1004, %v996
    %v1006 = vpop.permute.xlu0 %1005
    %1007 = vset.pattern.permute.xlu0 0
    %1008 = vperm.xlu0 %1007, %v997
    %v1009 = vpop.permute.xlu0 %1008
    %1010 = vset.pattern.permute.xlu0 0
    %1011 = vperm.xlu0 %1010, %v998
    %v1012 = vpop.permute.xlu0 %1011
    %1013 = vset.pattern.permute.xlu0 0
    %1014 = vperm.xlu0 %1013, %v999
    %v1015 = vpop.permute.xlu0 %1014
    %v1016 = vlaneseq
    %v1017 = vshrl.u32 %v1016, 7
    %v1018 = vsub.s32 %v707, %v1017
    %v1019 = vrot.slane %v1006, %v1018
    %v1020 = vlaneseq
    %v1021 = vshrl.u32 %v1020, 7
    %v1022 = vsub.s32 %v712, %v1021
    %v1023 = vrot.slane %v1009, %v1022
    %v1024 = vsel %vm717, %v1023, %v1019
    %v1025 = vlaneseq
    %v1026 = vshrl.u32 %v1025, 7
    %v1027 = vsub.s32 %v707, %v1026
    %v1028 = vrot.slane %v1012, %v1027
    %v1029 = vlaneseq
    %v1030 = vshrl.u32 %v1029, 7
    %v1031 = vsub.s32 %v712, %v1030
    %v1032 = vrot.slane %v1015, %v1031
    %v1033 = vsel %vm717, %v1032, %v1028
    %v1034 = vsel %vm883, %v1033, %v1024
    %v1036 = vsel %vm886, %v1034, 0.0
    %1037 = vadd.xlane.f32.xlu0 %v1036
    %v1038 = vpop.xlane.xlu0 %1037
    %v1039 = vmul.f32 %v1038, 0.0625
    %v1040 = vmul.f32 %v1039, 0.5
    %v1041 = vadd.f32 %v1040, 0.0
    %v1042 = vmul.f32 %v624, %v928
    %v1043 = vmul.f32 %v625, %v928
    %v1044 = vmul.f32 %v626, %v932
    %v1045 = vmul.f32 %v627, %v932
    %1046 = vadd.xlane.f32.xlu0 %v1042
    %v1047 = vpop.xlane.xlu0 %1046
    %1048 = vadd.xlane.f32.xlu0 %v1043
    %v1049 = vpop.xlane.xlu0 %1048
    %1050 = vadd.xlane.f32.xlu0 %v1044
    %v1051 = vpop.xlane.xlu0 %1050
    %1052 = vadd.xlane.f32.xlu0 %v1045
    %v1053 = vpop.xlane.xlu0 %1052
    %v1054 = vadd.f32 %v1047, %v954
    %v1055 = vadd.f32 %v1049, %v954
    %v1056 = vadd.f32 %v1051, %v958
    %v1057 = vadd.f32 %v1053, %v958
    %v1058 = vsub.f32 %v1054, %v674
    %v1059 = vsub.f32 %v1055, %v678
    %v1060 = vsub.f32 %v1056, %v685
    %v1061 = vsub.f32 %v1057, %v689
    %1064 = vset.pattern.permute.xlu0 0
    %1065 = vperm.xlu0 %1064, %v1058
    %v1066 = vpop.permute.xlu0 %1065
    %1067 = vset.pattern.permute.xlu0 0
    %1068 = vperm.xlu0 %1067, %v1059
    %v1069 = vpop.permute.xlu0 %1068
    %v1070 = vlaneseq
    %v1071 = vshrl.u32 %v1070, 7
    %v1072 = vsub.s32 %v707, %v1071
    %v1073 = vrot.slane %v1066, %v1072
    %v1074 = vlaneseq
    %v1075 = vshrl.u32 %v1074, 7
    %v1076 = vsub.s32 %v712, %v1075
    %v1077 = vrot.slane %v1069, %v1076
    %v1078 = vsel %vm717, %v1077, %v1073
    %v1079 = vsel %vm719, %v1078, 0
    %1081 = vmatprep.subr.mxu0 0.0
    %1082 = vmatpush1.msra.mxu0 %v624
    %1083 = vmatprep.subr.mxu0 0.0
    %1084 = vmatpush1.msra.mxu0 %v625
    %1085 = vmatprep.subr.mxu0 0.0
    %1086 = vmatpush1.msra.mxu0 0.0
    %1087 = vmatprep.subr.mxu0 0.0
    %1088 = vmatpush1.msra.mxu0 0.0
    %1089 = vmatprep.subr.mxu0 0.0
    %1090 = vmatpush1.msra.mxu0 0.0
    %1091 = vmatprep.subr.mxu0 0.0
    %1092 = vmatpush1.msra.mxu0 0.0
    %1093 = vmatprep.subr.mxu0 0.0
    %1094 = vmatpush1.msra.mxu0 0.0
    %1095 = vmatprep.subr.mxu0 0.0
    %1096 = vmatpush1.msra.mxu0 0.0
    %1097 = vmatprep.subr.mxu0 0.0
    %1098 = vmatpush1.msra.mxu0 0.0
    %1099 = vmatprep.subr.mxu0 0.0
    %1100 = vmatpush1.msra.mxu0 0.0
    %1101 = vmatprep.subr.mxu0 0.0
    %1102 = vmatpush1.msra.mxu0 0.0
    %1103 = vmatprep.subr.mxu0 0.0
    %1104 = vmatpush1.msra.mxu0 0.0
    %1105 = vmatprep.subr.mxu0 0.0
    %1106 = vmatpush1.msra.mxu0 0.0
    %1107 = vmatprep.subr.mxu0 0.0
    %1108 = vmatpush1.msra.mxu0 0.0
    %1109 = vmatprep.subr.mxu0 0.0
    %1110 = vmatpush1.msra.mxu0 0.0
    %1111 = vmatprep.subr.mxu0 0.0
    %1112 = vmatpush1.msra.mxu0 0.0
    %1113 = vmatprep.subr.mxu0 0.0
    %1114 = vmatpush1.msra.mxu0 0.0
    %1115 = vmatprep.subr.mxu0 0.0
    %1116 = vmatpush1.msra.mxu0 0.0
    %1117 = vmatprep.subr.mxu0 0.0
    %1118 = vmatpush1.msra.mxu0 0.0
    %1119 = vmatprep.subr.mxu0 0.0
    %1120 = vmatpush1.msra.mxu0 0.0
    %1121 = vmatprep.subr.mxu0 0.0
    %1122 = vmatpush1.msra.mxu0 0.0
    %1123 = vmatprep.subr.mxu0 0.0
    %1124 = vmatpush1.msra.mxu0 0.0
    %1125 = vmatprep.subr.mxu0 0.0
    %1126 = vmatpush1.msra.mxu0 0.0
    %1127 = vmatprep.subr.mxu0 0.0
    %1128 = vmatpush1.msra.mxu0 0.0
    %1129 = vmatprep.subr.mxu0 0.0
    %1130 = vmatpush1.msra.mxu0 0.0
    %1131 = vmatprep.subr.mxu0 0.0
    %1132 = vmatpush1.msra.mxu0 0.0
    %1133 = vmatprep.subr.mxu0 0.0
    %1134 = vmatpush1.msra.mxu0 0.0
    %1135 = vmatprep.subr.mxu0 0.0
    %1136 = vmatpush1.msra.mxu0 0.0
    %1137 = vmatprep.subr.mxu0 0.0
    %1138 = vmatpush1.msra.mxu0 0.0
    %1139 = vmatprep.subr.mxu0 0.0
    %1140 = vmatpush1.msra.mxu0 0.0
    %1141 = vmatprep.subr.mxu0 0.0
    %1142 = vmatpush1.msra.mxu0 0.0
    %1143 = vmatprep.subr.mxu0 0.0
    %1144 = vmatpush1.msra.mxu0 0.0
    %1145 = vmatprep.mubr.f32.mxu0 0.0
    %1146 = vmatmul.mubr.f32.gmra.mrb[0].mxu0 %v1079
    %v1147 = vpop.f32.mrb[0].mxu0
    %v1148 = vadd.f32 0.0, %v1147
    %v1149 = vpop.f32.mrb[0].mxu0
    %1150 = vdwg.mxu0
    %1153 = vset.pattern.permute.xlu0 0
    %1154 = vperm.xlu0 %1153, %v1060
    %v1155 = vpop.permute.xlu0 %1154
    %1156 = vset.pattern.permute.xlu0 0
    %1157 = vperm.xlu0 %1156, %v1061
    %v1158 = vpop.permute.xlu0 %1157
    %v1159 = vlaneseq
    %v1160 = vshrl.u32 %v1159, 7
    %v1161 = vsub.s32 %v707, %v1160
    %v1162 = vrot.slane %v1155, %v1161
    %v1163 = vlaneseq
    %v1164 = vshrl.u32 %v1163, 7
    %v1165 = vsub.s32 %v712, %v1164
    %v1166 = vrot.slane %v1158, %v1165
    %v1167 = vsel %vm717, %v1166, %v1162
    %v1168 = vsel %vm719, %v1167, 0
    %1170 = vmatprep.subr.mxu0 0.0
    %1171 = vmatpush1.msra.mxu0 %v626
    %1172 = vmatprep.subr.mxu0 0.0
    %1173 = vmatpush1.msra.mxu0 %v627
    %1174 = vmatprep.subr.mxu0 0.0
    %1175 = vmatpush1.msra.mxu0 0.0
    %1176 = vmatprep.subr.mxu0 0.0
    %1177 = vmatpush1.msra.mxu0 0.0
    %1178 = vmatprep.subr.mxu0 0.0
    %1179 = vmatpush1.msra.mxu0 0.0
    %1180 = vmatprep.subr.mxu0 0.0
    %1181 = vmatpush1.msra.mxu0 0.0
    %1182 = vmatprep.subr.mxu0 0.0
    %1183 = vmatpush1.msra.mxu0 0.0
    %1184 = vmatprep.subr.mxu0 0.0
    %1185 = vmatpush1.msra.mxu0 0.0
    %1186 = vmatprep.subr.mxu0 0.0
    %1187 = vmatpush1.msra.mxu0 0.0
    %1188 = vmatprep.subr.mxu0 0.0
    %1189 = vmatpush1.msra.mxu0 0.0
    %1190 = vmatprep.subr.mxu0 0.0
    %1191 = vmatpush1.msra.mxu0 0.0
    %1192 = vmatprep.subr.mxu0 0.0
    %1193 = vmatpush1.msra.mxu0 0.0
    %1194 = vmatprep.subr.mxu0 0.0
    %1195 = vmatpush1.msra.mxu0 0.0
    %1196 = vmatprep.subr.mxu0 0.0
    %1197 = vmatpush1.msra.mxu0 0.0
    %1198 = vmatprep.subr.mxu0 0.0
    %1199 = vmatpush1.msra.mxu0 0.0
    %1200 = vmatprep.subr.mxu0 0.0
    %1201 = vmatpush1.msra.mxu0 0.0
    %1202 = vmatprep.subr.mxu0 0.0
    %1203 = vmatpush1.msra.mxu0 0.0
    %1204 = vmatprep.subr.mxu0 0.0
    %1205 = vmatpush1.msra.mxu0 0.0
    %1206 = vmatprep.subr.mxu0 0.0
    %1207 = vmatpush1.msra.mxu0 0.0
    %1208 = vmatprep.subr.mxu0 0.0
    %1209 = vmatpush1.msra.mxu0 0.0
    %1210 = vmatprep.subr.mxu0 0.0
    %1211 = vmatpush1.msra.mxu0 0.0
    %1212 = vmatprep.subr.mxu0 0.0
    %1213 = vmatpush1.msra.mxu0 0.0
    %1214 = vmatprep.subr.mxu0 0.0
    %1215 = vmatpush1.msra.mxu0 0.0
    %1216 = vmatprep.subr.mxu0 0.0
    %1217 = vmatpush1.msra.mxu0 0.0
    %1218 = vmatprep.subr.mxu0 0.0
    %1219 = vmatpush1.msra.mxu0 0.0
    %1220 = vmatprep.subr.mxu0 0.0
    %1221 = vmatpush1.msra.mxu0 0.0
    %1222 = vmatprep.subr.mxu0 0.0
    %1223 = vmatpush1.msra.mxu0 0.0
    %1224 = vmatprep.subr.mxu0 0.0
    %1225 = vmatpush1.msra.mxu0 0.0
    %1226 = vmatprep.subr.mxu0 0.0
    %1227 = vmatpush1.msra.mxu0 0.0
    %1228 = vmatprep.subr.mxu0 0.0
    %1229 = vmatpush1.msra.mxu0 0.0
    %1230 = vmatprep.subr.mxu0 0.0
    %1231 = vmatpush1.msra.mxu0 0.0
    %1232 = vmatprep.subr.mxu0 0.0
    %1233 = vmatpush1.msra.mxu0 0.0
    %1234 = vmatprep.mubr.f32.mxu0 0.0
    %1235 = vmatmul.mubr.f32.gmra.mrb[0].mxu0 %v1168
    %v1236 = vpop.f32.mrb[0].mxu0
    %v1237 = vadd.f32 0.0, %v1236
    %v1238 = vpop.f32.mrb[0].mxu0
    %1239 = vdwg.mxu0
    %v1240 = vmul.f32 %v1148, 0.125
    %v1241 = vmul.f32 %v1237, 0.125
    %v1242 = vsel %vm883, %v1167, %v1078
    %v1244 = vsel %vm886, %v1242, 0.0
    %1245 = vadd.xlane.f32.xlu0 %v1244
    %v1246 = vpop.xlane.xlu0 %1245
    %v1247 = vmul.f32 %v1246, 0.125
    %v1248 = vmul.f32 %v1240, 0.01
    %v1249 = vmul.f32 %v1241, 0.01
    %v1252 = vrot.slane %v1249, 7
    %v1253 = vsel %vm883, %v1252, %v1248
    %v1255 = vsub.f32 %v898, %v1253
    %v1256 = vmul.f32 %v1247, 0.01
    %v1257 = vsub.f32 %v901, %v1256
    %v1260 = vunpack.c.l.s4 1966171168
    %v1261 = vunpack.c.0.s8 %v1260
    %v1262 = vlaneseq
    %v1263 = vshrl.u32 %v1262, 7
    %v1264 = vsub.s32 %v1261, %v1263
    %v1265 = vrot.slane %v1255, %v1264
    %v1266 = vcombine.high %v1265, %v1265
    %v1268 = vunpack.c.l.s4 1966171168
    %v1269 = vunpack.c.0.s8 %v1268
    %v1270 = vlaneseq
    %v1271 = vshrl.u32 %v1270, 7
    %v1272 = vsub.s32 %v1269, %v1271
    %v1273 = vrot.slane %v1265, %v1272
    %v1275 = vunpack.c.l.s4 1966171168
    %v1276 = vunpack.c.0.s8 %v1275
    %v1277 = vlaneseq
    %v1278 = vshrl.u32 %v1277, 7
    %v1279 = vsub.s32 %v1276, %v1278
    %v1280 = vrot.slane %v1266, %v1279
    %v1281 = vlaneseq
    %v1282 = vshrl.u32 %v1281, 7
    %v1283 = vsub.s32 0, %v1282
    %v1284 = vrot.slane %v1273, %v1283
    %v1285 = vlaneseq
    %v1286 = vshrl.u32 %v1285, 7
    %v1287 = vsub.s32 0, %v1286
    %v1288 = vrot.slane %v1280, %v1287
    %v1291 = vmul.f32 %v628, %v1284
    %v1292 = vmul.f32 %v629, %v1284
    %v1293 = vmul.f32 %v630, %v1288
    %v1294 = vmul.f32 %v631, %v1288
    %1295 = vadd.xlane.f32.xlu0 %v1291
    %v1296 = vpop.xlane.xlu0 %1295
    %1297 = vadd.xlane.f32.xlu0 %v1292
    %v1298 = vpop.xlane.xlu0 %1297
    %1299 = vadd.xlane.f32.xlu0 %v1293
    %v1300 = vpop.xlane.xlu0 %1299
    %1301 = vadd.xlane.f32.xlu0 %v1294
    %v1302 = vpop.xlane.xlu0 %1301
    %1304 = vset.pattern.permute.xlu0 0
    %1305 = vperm.xlu0 %1304, %v1257
    %v1306 = vpop.permute.xlu0 %1305
    %v1307 = vlaneseq
    %v1308 = vshrl.u32 %v1307, 7
    %v1309 = vsub.s32 0, %v1308
    %v1310 = vrot.slane %v1306, %v1309
    %v1311 = vlaneseq
    %v1312 = vshrl.u32 %v1311, 7
    %v1313 = vsub.s32 1, %v1312
    %v1314 = vrot.slane %v1306, %v1313
    %v1317 = vadd.f32 %v1296, %v1310
    %v1318 = vadd.f32 %v1298, %v1310
    %v1319 = vadd.f32 %v1300, %v1314
    %v1320 = vadd.f32 %v1302, %v1314
    %v1321 = vsub.f32 %v1317, %v972
    %v1322 = vsub.f32 %v1318, %v976
    %v1323 = vsub.f32 %v1319, %v983
    %v1324 = vsub.f32 %v1320, %v987
    %v1325 = vmul.f32 %v1321, %v1321
    %v1326 = vmul.f32 %v1322, %v1322
    %v1327 = vmul.f32 %v1323, %v1323
    %v1328 = vmul.f32 %v1324, %v1324
    %1333 = vset.pattern.permute.xlu0 0
    %1334 = vperm.xlu0 %1333, %v1325
    %v1335 = vpop.permute.xlu0 %1334
    %1336 = vset.pattern.permute.xlu0 0
    %1337 = vperm.xlu0 %1336, %v1326
    %v1338 = vpop.permute.xlu0 %1337
    %1339 = vset.pattern.permute.xlu0 0
    %1340 = vperm.xlu0 %1339, %v1327
    %v1341 = vpop.permute.xlu0 %1340
    %1342 = vset.pattern.permute.xlu0 0
    %1343 = vperm.xlu0 %1342, %v1328
    %v1344 = vpop.permute.xlu0 %1343
    %v1345 = vlaneseq
    %v1346 = vshrl.u32 %v1345, 7
    %v1347 = vsub.s32 %v707, %v1346
    %v1348 = vrot.slane %v1335, %v1347
    %v1349 = vlaneseq
    %v1350 = vshrl.u32 %v1349, 7
    %v1351 = vsub.s32 %v712, %v1350
    %v1352 = vrot.slane %v1338, %v1351
    %v1353 = vsel %vm717, %v1352, %v1348
    %v1354 = vlaneseq
    %v1355 = vshrl.u32 %v1354, 7
    %v1356 = vsub.s32 %v707, %v1355
    %v1357 = vrot.slane %v1341, %v1356
    %v1358 = vlaneseq
    %v1359 = vshrl.u32 %v1358, 7
    %v1360 = vsub.s32 %v712, %v1359
    %v1361 = vrot.slane %v1344, %v1360
    %v1362 = vsel %vm717, %v1361, %v1357
    %v1363 = vsel %vm883, %v1362, %v1353
    %v1365 = vsel %vm886, %v1363, 0.0
    %1366 = vadd.xlane.f32.xlu0 %v1365
    %v1367 = vpop.xlane.xlu0 %1366
    %v1368 = vmul.f32 %v1367, 0.0625
    %v1369 = vmul.f32 %v1368, 0.5
    %v1370 = vadd.f32 %v1041, %v1369
    %v1371 = vsel %vm886, %v633, 0.0
    %1372 = vadd.xlane.f32.xlu0 %v1371
    %v1373 = vpop.xlane.xlu0 %1372
    %v1374 = vrcp.pop 16.0
    %v1375 = vmul.f32 %v1373, %v1374
    %v1376 = vsub.f32 %v633, %v1375
    %1381 = vset.pattern.permute.xlu0 0
    %1382 = vperm.xlu0 %1381, %v1317
    %v1383 = vpop.permute.xlu0 %1382
    %1384 = vset.pattern.permute.xlu0 0
    %1385 = vperm.xlu0 %1384, %v1318
    %v1386 = vpop.permute.xlu0 %1385
    %1387 = vset.pattern.permute.xlu0 0
    %1388 = vperm.xlu0 %1387, %v1319
    %v1389 = vpop.permute.xlu0 %1388
    %1390 = vset.pattern.permute.xlu0 0
    %1391 = vperm.xlu0 %1390, %v1320
    %v1392 = vpop.permute.xlu0 %1391
    %v1393 = vlaneseq
    %v1394 = vshrl.u32 %v1393, 7
    %v1395 = vsub.s32 %v707, %v1394
    %v1396 = vrot.slane %v1383, %v1395
    %v1397 = vlaneseq
    %v1398 = vshrl.u32 %v1397, 7
    %v1399 = vsub.s32 %v712, %v1398
    %v1400 = vrot.slane %v1386, %v1399
    %v1401 = vsel %vm717, %v1400, %v1396
    %v1402 = vlaneseq
    %v1403 = vshrl.u32 %v1402, 7
    %v1404 = vsub.s32 %v707, %v1403
    %v1405 = vrot.slane %v1389, %v1404
    %v1406 = vlaneseq
    %v1407 = vshrl.u32 %v1406, 7
    %v1408 = vsub.s32 %v712, %v1407
    %v1409 = vrot.slane %v1392, %v1408
    %v1410 = vsel %vm717, %v1409, %v1405
    %v1411 = vsel %vm883, %v1410, %v1401
    %v1413 = vsel %vm886, %v1411, 0.0
    %1414 = vadd.xlane.f32.xlu0 %v1413
    %v1415 = vpop.xlane.xlu0 %1414
    %v1416 = vmul.f32 %v1415, %v1374
    %v1418 = vlaneseq
    %v1419 = vshrl.u32 %v1418, 7
    %v1420 = vsub.s32 0, %v1419
    %v1421 = vrot.slane %v1416, %v1420
    %v1422 = vlaneseq
    %v1423 = vshrl.u32 %v1422, 7
    %v1424 = vsub.s32 1, %v1423
    %v1425 = vrot.slane %v1416, %v1424
    %v1428 = vsub.f32 %v1317, %v1421
    %v1429 = vsub.f32 %v1318, %v1421
    %v1430 = vsub.f32 %v1319, %v1425
    %v1431 = vsub.f32 %v1320, %v1425
    %1436 = vset.pattern.permute.xlu0 0
    %1437 = vperm.xlu0 %1436, %v1428
    %v1438 = vpop.permute.xlu0 %1437
    %1439 = vset.pattern.permute.xlu0 0
    %1440 = vperm.xlu0 %1439, %v1429
    %v1441 = vpop.permute.xlu0 %1440
    %1442 = vset.pattern.permute.xlu0 0
    %1443 = vperm.xlu0 %1442, %v1430
    %v1444 = vpop.permute.xlu0 %1443
    %1445 = vset.pattern.permute.xlu0 0
    %1446 = vperm.xlu0 %1445, %v1431
    %v1447 = vpop.permute.xlu0 %1446
    %v1448 = vlaneseq
    %v1449 = vshrl.u32 %v1448, 7
    %v1450 = vsub.s32 %v707, %v1449
    %v1451 = vrot.slane %v1438, %v1450
    %v1452 = vlaneseq
    %v1453 = vshrl.u32 %v1452, 7
    %v1454 = vsub.s32 %v712, %v1453
    %v1455 = vrot.slane %v1441, %v1454
    %v1456 = vsel %vm717, %v1455, %v1451
    %v1457 = vlaneseq
    %v1458 = vshrl.u32 %v1457, 7
    %v1459 = vsub.s32 %v707, %v1458
    %v1460 = vrot.slane %v1444, %v1459
    %v1461 = vlaneseq
    %v1462 = vshrl.u32 %v1461, 7
    %v1463 = vsub.s32 %v712, %v1462
    %v1464 = vrot.slane %v1447, %v1463
    %v1465 = vsel %vm717, %v1464, %v1460
    %v1466 = vsel %vm883, %v1465, %v1456
    %v1468 = vmul.f32 %v1376, %v1466
    %v1469 = vsel %vm886, %v1468, 0.0
    %1470 = vadd.xlane.f32.xlu0 %v1469
    %v1471 = vpop.xlane.xlu0 %1470
    %v1472 = vmul.f32 %v1376, %v1376
    %v1473 = vsel %vm886, %v1472, 0.0
    %1474 = vadd.xlane.f32.xlu0 %v1473
    %v1475 = vpop.xlane.xlu0 %1474
    %v1476 = vrsqrt.pop %v1475
    %v1477 = vmul.f32 %v1475, %v1476
    %vm1478 = vcmp.eq.f32.partialorder %v1475, inf
    %v1479 = vsel %vm1478, %v1475, %v1477
    %vm1480 = vcmp.eq.f32.partialorder %v1475, 0.0
    %v1481 = vand.u32 %v1475, 2147483648
    %v1482 = vsel %vm1480, %v1481, %v1479
    %v1483 = vmul.f32 %v1428, %v1428
    %v1484 = vmul.f32 %v1429, %v1429
    %v1485 = vmul.f32 %v1430, %v1430
    %v1486 = vmul.f32 %v1431, %v1431
    %1491 = vset.pattern.permute.xlu0 0
    %1492 = vperm.xlu0 %1491, %v1483
    %v1493 = vpop.permute.xlu0 %1492
    %1494 = vset.pattern.permute.xlu0 0
    %1495 = vperm.xlu0 %1494, %v1484
    %v1496 = vpop.permute.xlu0 %1495
    %1497 = vset.pattern.permute.xlu0 0
    %1498 = vperm.xlu0 %1497, %v1485
    %v1499 = vpop.permute.xlu0 %1498
    %1500 = vset.pattern.permute.xlu0 0
    %1501 = vperm.xlu0 %1500, %v1486
    %v1502 = vpop.permute.xlu0 %1501
    %v1503 = vlaneseq
    %v1504 = vshrl.u32 %v1503, 7
    %v1505 = vsub.s32 %v707, %v1504
    %v1506 = vrot.slane %v1493, %v1505
    %v1507 = vlaneseq
    %v1508 = vshrl.u32 %v1507, 7
    %v1509 = vsub.s32 %v712, %v1508
    %v1510 = vrot.slane %v1496, %v1509
    %v1511 = vsel %vm717, %v1510, %v1506
    %v1512 = vlaneseq
    %v1513 = vshrl.u32 %v1512, 7
    %v1514 = vsub.s32 %v707, %v1513
    %v1515 = vrot.slane %v1499, %v1514
    %v1516 = vlaneseq
    %v1517 = vshrl.u32 %v1516, 7
    %v1518 = vsub.s32 %v712, %v1517
    %v1519 = vrot.slane %v1502, %v1518
    %v1520 = vsel %vm717, %v1519, %v1515
    %v1521 = vsel %vm883, %v1520, %v1511
    %v1523 = vsel %vm886, %v1521, 0.0
    %1524 = vadd.xlane.f32.xlu0 %v1523
    %v1525 = vpop.xlane.xlu0 %1524
    %v1526 = vrsqrt.pop %v1525
    %v1527 = vmul.f32 %v1525, %v1526
    %vm1528 = vcmp.eq.f32.partialorder %v1525, inf
    %v1529 = vsel %vm1528, %v1525, %v1527
    %vm1530 = vcmp.eq.f32.partialorder %v1525, 0.0
    %v1531 = vand.u32 %v1525, 2147483648
    %v1532 = vsel %vm1530, %v1531, %v1529
    %v1533 = vmul.f32 %v1482, %v1532
    %v1534 = vadd.f32 %v1533, 1e-12
    %v1535 = vrcp.pop %v1534
    %v1536 = vmul.f32 %v1471, %v1535
    %1537 = vst [vmem:[%s14] sm:$0x3] 0.0
    %1538 = vst.msk [vmem:[%s14] sm:$0x3] %vm886, %v1411
    %vm1539 = vcmask 132224
    %1540 = vst.msk [vmem:[%s14] sm:$0x3] %vm1539, %v1370
    %vm1541 = vcmask 140424
    %1542 = vst.msk [vmem:[%s14] sm:$0x3] %vm1541, %v1536
    // Predicated region
    $region78: #{maml_forward.1} parent=1 // pred_check
      _
    $region79: #{maml_forward.1} parent=1 // pred_check_branch
      %1544 = sbr.rel (0) target = $region81
    $region80: #{maml_forward.1} parent=1 // pred_region
      _
    $region81: #{maml_forward.1} parent=1 // pred_fallthru
      _
    // Predicated region
    $region82: #{maml_forward.1} parent=1 // pred_check
      _
    $region83: #{maml_forward.1} parent=1 // pred_check_branch
      %1546 = sbr.rel (0) target = $region85
    $region84: #{maml_forward.1} parent=1 // pred_region
      _
    $region85: #{maml_forward.1} parent=1 // pred_fallthru
      _
    %1547 = vsyncpa [#allocation4], 1
    %1548 = vsyncpa [#allocation6], 1
    %1549 = vsyncpa [#allocation9], 1

</llo_original>
